<compile_context>
chip_gen: v5e
topology: v5e:2x2
jax: 0.10.0
libtpu: 0.0.40
codegen_flags: <defaults>
</compile_context>

<pallas_src>
import functools

import jax
import jax.numpy as jnp
from jax.experimental import pallas as pl
from jax.experimental.pallas import tpu as pltpu


# -----------------------------------------------------------------------------
# Fused Pallas kernel: conv1 -> BN1 -> ReLU -> conv2 -> BN2 -> +x -> ReLU
# -----------------------------------------------------------------------------
def _basic_block_kernel(x_ref, w1_ref, g1_ref, b1_ref, w2_ref, g2_ref, b2_ref,
                        o_ref, zbuf, *, B, H, W, C, eps):
    """All shapes are lane-dense (last dim = W*C).

    x_ref   (B*H, W*C)    f32   input rows (also the residual)
    w*_ref  (3, LIN, W*C) bf16  per-kh block weights (kw taps folded in)
    g*/b*   (1, W*C)      f32   BN gamma/beta pre-tiled to the (w*C + c) lane layout
    o_ref   (B*H, W*C)    f32   block output rows
    zbuf    (PROWS, LIN)  f32   VMEM scratch: stacked, zero-padded conv input
    """
    WC = W * C
    RPAD = H + 8                       # per-image padded region (8-row zero gap = halo)
    M = (B - 1) * RPAD + H             # rows fed to each MXU matmul (incl. gap rows)
    inv_count = 1.0 / float(B * H * W)  # elements per channel for BN batch stats

    def stage(b):                      # sublane-aligned start row of image b's data
        return 8 + b * RPAD

    # ---- staging-buffer init: zero halo rows / pad lanes exactly once ---------
    zbuf[...] = jnp.zeros(zbuf.shape, zbuf.dtype)
    for b in range(B):
        zbuf[stage(b):stage(b) + H, 0:WC] = x_ref[b * H:(b + 1) * H, :]

    # ---- one 3x3 conv (stride 1, pad 1) over the stacked, padded buffer -------
    def conv_pass(w_ref):
        xz = zbuf[...].astype(jnp.bfloat16)           # single f32->bf16 cast per pass
        acc = jnp.zeros((M, WC), jnp.float32)
        for kh in range(3):                           # 3 MXU matmuls, bf16 in / f32 acc
            acc = acc + jnp.dot(xz[7 + kh:7 + kh + M, :], w_ref[kh],
                                preferred_element_type=jnp.float32)
        # valid output rows of image b sit at aligned offsets [b*RPAD, b*RPAD + H)
        return [acc[b * RPAD:b * RPAD + H, :] for b in range(B)]

    # ---- fold lane-dense (1, W*C) stats to per-channel totals (XLU rolls) -----
    def fold_channels(v):
        out = v
        for w in range(1, W):
            out = out + pltpu.roll(v, shift=w * C, axis=1)
        return out                                    # per-channel total on every lane

    # ---- training-mode BatchNorm2d -> per-lane affine (two-pass variance) -----
    def bn_affine(blocks, g_ref, b_ref):
        csum = jnp.zeros((1, WC), jnp.float32)
        for blk in blocks:
            csum = csum + jnp.sum(blk, axis=0, keepdims=True)
        mean_t = fold_channels(csum) * inv_count
        cvar = jnp.zeros((1, WC), jnp.float32)
        for blk in blocks:                            # centered second moment (stable)
            d = blk - mean_t
            cvar = cvar + jnp.sum(d * d, axis=0, keepdims=True)
        var_t = fold_channels(cvar) * inv_count
        scale = g_ref[...] * jax.lax.rsqrt(var_t + eps)
        shift = b_ref[...] - mean_t * scale
        return scale, shift

    # conv1 + BN1 batch statistics (c1 never leaves VMEM)
    c1 = conv_pass(w1_ref)
    s1, t1 = bn_affine(c1, g1_ref, b1_ref)

    # BN1 affine + ReLU fused into conv2's staging write (halos stay zero)
    for b in range(B):
        zbuf[stage(b):stage(b) + H, 0:WC] = jnp.maximum(c1[b] * s1 + t1, 0.0)

    # conv2 + BN2 batch statistics
    c2 = conv_pass(w2_ref)
    s2, t2 = bn_affine(c2, g2_ref, b2_ref)

    # BN2 affine + residual add + ReLU fused into the lane-dense output store
    for b in range(B):
        o_ref[b * H:(b + 1) * H, :] = jnp.maximum(
            c2[b] * s2 + t2 + x_ref[b * H:(b + 1) * H, :], 0.0)


# -----------------------------------------------------------------------------
# pallas_call wrapper
# -----------------------------------------------------------------------------
def basic_block_pallas(x2d, wbig1, g1t, b1t, wbig2, g2t, b2t, *, B, H, W, C, eps=1e-5):
    WC = W * C
    LIN = wbig1.shape[1]
    RPAD = H + 8
    PROWS = 8 + B * RPAD               # leading 8 zero rows + B padded image regions
    kernel = functools.partial(_basic_block_kernel, B=B, H=H, W=W, C=C, eps=eps)
    return pl.pallas_call(
        kernel,
        out_shape=jax.ShapeDtypeStruct((B * H, WC), jnp.float32),
        grid=(1,),                      # whole batch in one step: BN needs batch stats
        in_specs=[
            pl.BlockSpec((B * H, WC), lambda i: (0, 0)),
            pl.BlockSpec((3, LIN, WC), lambda i: (0, 0, 0)),
            pl.BlockSpec((1, WC), lambda i: (0, 0)),
            pl.BlockSpec((1, WC), lambda i: (0, 0)),
            pl.BlockSpec((3, LIN, WC), lambda i: (0, 0, 0)),
            pl.BlockSpec((1, WC), lambda i: (0, 0)),
            pl.BlockSpec((1, WC), lambda i: (0, 0)),
        ],
        out_specs=pl.BlockSpec((B * H, WC), lambda i: (0, 0)),
        scratch_shapes=[pltpu.VMEM((PROWS, LIN), jnp.float32)],
        compiler_params=pltpu.CompilerParams(dimension_semantics=("arbitrary",)),
    )(x2d, wbig1, g1t, b1t, wbig2, g2t, b2t)


# -----------------------------------------------------------------------------
# Parameter preparation (hoisted OUT of the jitted forward; run per weight update)
# -----------------------------------------------------------------------------
def apply_nm_sparsity(w_oihw, N=2, M=4):
    """DominoSearch SparseConv mask: keep N largest-|w| of each group of M along
    input channels. Applied as a dense mask (MXU gets no sparse speedup)."""
    O, I, kh, kw = w_oihw.shape
    wp = jnp.transpose(w_oihw, (0, 2, 3, 1)).reshape(-1, M)
    order = jnp.argsort(jnp.abs(wp), axis=1)                  # ascending
    ranks = jnp.argsort(order, axis=1)
    mask = ranks >= (M - N)
    wm = jnp.where(mask, wp, 0.0).reshape(O, kh, kw, I)
    return jnp.transpose(wm, (0, 3, 1, 2))


def build_block_weights(w_oihw_masked, W, dtype=jnp.bfloat16):
    """Fold kw taps into block weights: Wbig[kh, (w+kw-1)*Cin+ci, w*Cout+co] = w[kh,kw,ci,co]
    so acc = sum_kh zbuf_rows @ Wbig[kh] is the padded 3x3 conv. Left-edge taps are
    dropped (zero pad); right-edge taps hit the zero lanes of the staging buffer.
    LIN rounds the contraction dim up to the bf16 sublane pack (16), not 128."""
    O, I, KH, KW = w_oihw_masked.shape
    Cin, Cout = I, O
    w = jnp.transpose(w_oihw_masked, (2, 3, 1, 0)).astype(jnp.float32)  # (kh,kw,Cin,Cout)
    rows = (W + 1) * Cin
    lin = ((rows + 15) // 16) * 16
    mats = []
    for kh in range(KH):
        m = jnp.zeros((rows, W * Cout), jnp.float32)
        for kw in range(KW):
            sel = jnp.eye(W + 1, W, k=1 - kw, dtype=jnp.float32)   # [(w+kw-1), w] = 1
            m = m + jnp.einsum('vw,io->viwo', sel, w[kh, kw]).reshape(rows, W * Cout)
        mats.append(jnp.pad(m, ((0, lin - rows), (0, 0))))
    return jnp.stack(mats).astype(dtype)


def _tile_channel_param(p, W):
    """Per-channel (C,) -> lane layout (1, W*C) where lane = w*C + c."""
    return jnp.tile(p.astype(jnp.float32), W).reshape(1, W * p.shape[0])


def prepare_block_params(w1, g1, b1, w2, g2, b2, W):
    wbig1 = build_block_weights(apply_nm_sparsity(w1), W)
    wbig2 = build_block_weights(apply_nm_sparsity(w2), W)
    return (wbig1, _tile_channel_param(g1, W), _tile_channel_param(b1, W),
            wbig2, _tile_channel_param(g2, W), _tile_channel_param(b2, W))


# -----------------------------------------------------------------------------
# BasicBlock forward
# -----------------------------------------------------------------------------
@jax.jit
def basic_block_forward(x_nchw, wbig1, g1t, b1t, wbig2, g2t, b2t):
    B, C, H, W = x_nchw.shape
    assert H % 8 == 0, "aligned staging assumes H is a multiple of 8"
    # NCHW -> lane-dense (B*H, W*C) rows (W*C = 128 at these shapes)
    x2d = jnp.transpose(x_nchw, (0, 2, 3, 1)).reshape(B * H, W * C).astype(jnp.float32)
    out2d = basic_block_pallas(x2d, wbig1, g1t, b1t, wbig2, g2t, b2t,
                               B=B, H=H, W=W, C=C, eps=1e-5)
    return jnp.transpose(out2d.reshape(B, H, W, C), (0, 3, 1, 2))


# -----------------------------------------------------------------------------
# Pure-JAX reference (for self-check)
# -----------------------------------------------------------------------------
def reference_forward(x_nchw, w1_oihw, g1, b1, w2_oihw, g2, b2, eps=1e-5):
    def conv(x, w):
        return jax.lax.conv_general_dilated(
            x, w, window_strides=(1, 1), padding=((1, 1), (1, 1)),
            dimension_numbers=("NCHW", "OIHW", "NCHW"))

    def bn(y, g, b):
        mean = jnp.mean(y, axis=(0, 2, 3), keepdims=True)
        var = jnp.mean(jnp.square(y - mean), axis=(0, 2, 3), keepdims=True)
        return (y - mean) * jax.lax.rsqrt(var + eps) * g.reshape(1, -1, 1, 1) \
               + b.reshape(1, -1, 1, 1)

    residual = x_nchw
    out = conv(x_nchw, apply_nm_sparsity(w1_oihw))
    out = jnp.maximum(bn(out, g1, b1), 0.0)
    out = conv(out, apply_nm_sparsity(w2_oihw))
    out = bn(out, g2, b2) + residual
    return jnp.maximum(out, 0.0)


# -----------------------------------------------------------------------------
if __name__ == "__main__":
    B, C, H, W = 2, 8, 16, 16   # inplanes = planes = 8, stride = 1, downsample = None
    key = jax.random.PRNGKey(0)
    k_x, k_w1, k_w2, k_g1, k_g2, k_b1, k_b2 = jax.random.split(key, 7)

    x = jax.random.normal(k_x, (B, C, H, W), jnp.float32)
    w1 = 0.1 * jax.random.normal(k_w1, (C, C, 3, 3), jnp.float32)
    w2 = 0.1 * jax.random.normal(k_w2, (C, C, 3, 3), jnp.float32)
    gamma1 = 1.0 + 0.1 * jax.random.normal(k_g1, (C,), jnp.float32)
    gamma2 = 1.0 + 0.1 * jax.random.normal(k_g2, (C,), jnp.float32)
    beta1 = 0.1 * jax.random.normal(k_b1, (C,), jnp.float32)
    beta2 = 0.1 * jax.random.normal(k_b2, (C,), jnp.float32)

    # Weight masking / block-weight build / BN-param tiling done once, outside jit.
    params = prepare_block_params(w1, gamma1, beta1, w2, gamma2, beta2, W)

    out = basic_block_forward(x, *params)
    out = jax.block_until_ready(out)

    ref = reference_forward(x, w1, gamma1, beta1, w2, gamma2, beta2)
    assert out.shape == (B, C, H, W)
    # bf16 MXU operands (f32 accumulation) -> slightly looser tolerance than pure f32
    assert jnp.allclose(out, ref, rtol=3e-2, atol=3e-2), (
        "max abs diff = " + str(float(jnp.max(jnp.abs(out - ref)))))

    print("KERNEL_OK")
</pallas_src>

<mosaic_0001>
module attributes {stable_mosaic.version = 11 : i64} {
  func.func @_basic_block_kernel(%arg0: i32, %arg1: memref<32x128xf32, #tpu.memory_space<vmem>>, %arg2: memref<3x144x128xbf16, #tpu.memory_space<vmem>>, %arg3: memref<1x128xf32, #tpu.memory_space<vmem>>, %arg4: memref<1x128xf32, #tpu.memory_space<vmem>>, %arg5: memref<3x144x128xbf16, #tpu.memory_space<vmem>>, %arg6: memref<1x128xf32, #tpu.memory_space<vmem>>, %arg7: memref<1x128xf32, #tpu.memory_space<vmem>>, %arg8: memref<32x128xf32, #tpu.memory_space<vmem>>, %arg9: memref<56x144xf32, #tpu.memory_space<vmem>>) attributes {dimension_semantics = [#tpu.dimension_semantics<arbitrary>], iteration_bounds = array<i64: 1>, scalar_prefetch = 0 : i64, scratch_operands = 1 : i64, tpu.core_type = #tpu.core_type<tc>, window_params = [{pipeline_mode = #tpu.pipeline_mode<synchronous>, transform_indices = @transform_0, window_bounds = array<i64: 32, 128>}, {pipeline_mode = #tpu.pipeline_mode<synchronous>, transform_indices = @transform_1, window_bounds = array<i64: 3, 144, 128>}, {pipeline_mode = #tpu.pipeline_mode<synchronous>, transform_indices = @transform_2, window_bounds = array<i64: 1, 128>}, {pipeline_mode = #tpu.pipeline_mode<synchronous>, transform_indices = @transform_3, window_bounds = array<i64: 1, 128>}, {pipeline_mode = #tpu.pipeline_mode<synchronous>, transform_indices = @transform_4, window_bounds = array<i64: 3, 144, 128>}, {pipeline_mode = #tpu.pipeline_mode<synchronous>, transform_indices = @transform_5, window_bounds = array<i64: 1, 128>}, {pipeline_mode = #tpu.pipeline_mode<synchronous>, transform_indices = @transform_6, window_bounds = array<i64: 1, 128>}, {pipeline_mode = #tpu.pipeline_mode<synchronous>, transform_indices = @transform_7, window_bounds = array<i64: 32, 128>}]} {
    %cst = arith.constant 0.000000e+00 : f32
    %0 = vector.broadcast %cst : f32 to vector<56x144xf32>
    %c0 = arith.constant 0 : index
    %c0_0 = arith.constant 0 : index
    %1 = vector.load %arg9[%c0, %c0_0] : memref<56x144xf32, #tpu.memory_space<vmem>>, vector<56x144xf32>
    tpu.vector_store %arg9[%c0, %c0_0], %0 {strides = array<i32>} : memref<56x144xf32, #tpu.memory_space<vmem>>, vector<56x144xf32>,
    %c0_1 = arith.constant 0 : index
    %c0_2 = arith.constant 0 : index
    %2 = vector.load %arg1[%c0_1, %c0_2] : memref<32x128xf32, #tpu.memory_space<vmem>>, vector<16x128xf32>
    %c8 = arith.constant 8 : index
    %c0_3 = arith.constant 0 : index
    %3 = vector.load %arg9[%c8, %c0_3] : memref<56x144xf32, #tpu.memory_space<vmem>>, vector<16x128xf32>
    tpu.vector_store %arg9[%c8, %c0_3], %2 {strides = array<i32>} : memref<56x144xf32, #tpu.memory_space<vmem>>, vector<16x128xf32>,
    %c16 = arith.constant 16 : index
    %c0_4 = arith.constant 0 : index
    %4 = vector.load %arg1[%c16, %c0_4] : memref<32x128xf32, #tpu.memory_space<vmem>>, vector<16x128xf32>
    %c32 = arith.constant 32 : index
    %c0_5 = arith.constant 0 : index
    %5 = vector.load %arg9[%c32, %c0_5] : memref<56x144xf32, #tpu.memory_space<vmem>>, vector<16x128xf32>
    tpu.vector_store %arg9[%c32, %c0_5], %4 {strides = array<i32>} : memref<56x144xf32, #tpu.memory_space<vmem>>, vector<16x128xf32>,
    %c0_6 = arith.constant 0 : index
    %c0_7 = arith.constant 0 : index
    %6 = vector.load %arg9[%c0_6, %c0_7] : memref<56x144xf32, #tpu.memory_space<vmem>>, vector<56x144xf32>
    %7 = arith.truncf %6 : vector<56x144xf32> to vector<56x144xbf16>
    %cst_8 = arith.constant 0.000000e+00 : f32
    %8 = vector.broadcast %cst_8 : f32 to vector<40x128xf32>
    %9 = vector.extract_strided_slice %7 {offsets = [7, 0], sizes = [40, 144], strides = [1, 1]} : vector<56x144xbf16> to vector<40x144xbf16>
    %c0_9 = arith.constant 0 : index
    %c0_10 = arith.constant 0 : index
    %c0_11 = arith.constant 0 : index
    %10 = vector.load %arg2[%c0_9, %c0_10, %c0_11] : memref<3x144x128xbf16, #tpu.memory_space<vmem>>, vector<1x144x128xbf16>
    %11 = vector.shape_cast %10 : vector<1x144x128xbf16> to vector<144x128xbf16>
    %cst_12 = arith.constant dense<0.000000e+00> : vector<40x128xf32>
    %12 = tpu.matmul %9, %11, %cst_12 {dimension_numbers = #tpu.dot_dimension_numbers<[1], [0], [0], [1], [0, 0, 1, 1], [], []>} : vector<40x144xbf16>, vector<144x128xbf16>, vector<40x128xf32> -> vector<40x128xf32>
    %13 = arith.addf %8, %12 : vector<40x128xf32>
    %14 = vector.extract_strided_slice %7 {offsets = [8, 0], sizes = [40, 144], strides = [1, 1]} : vector<56x144xbf16> to vector<40x144xbf16>
    %c1 = arith.constant 1 : index
    %c0_13 = arith.constant 0 : index
    %c0_14 = arith.constant 0 : index
    %15 = vector.load %arg2[%c1, %c0_13, %c0_14] : memref<3x144x128xbf16, #tpu.memory_space<vmem>>, vector<1x144x128xbf16>
    %16 = vector.shape_cast %15 : vector<1x144x128xbf16> to vector<144x128xbf16>
    %cst_15 = arith.constant dense<0.000000e+00> : vector<40x128xf32>
    %17 = tpu.matmul %14, %16, %cst_15 {dimension_numbers = #tpu.dot_dimension_numbers<[1], [0], [0], [1], [0, 0, 1, 1], [], []>} : vector<40x144xbf16>, vector<144x128xbf16>, vector<40x128xf32> -> vector<40x128xf32>
    %18 = arith.addf %13, %17 : vector<40x128xf32>
    %19 = vector.extract_strided_slice %7 {offsets = [9, 0], sizes = [40, 144], strides = [1, 1]} : vector<56x144xbf16> to vector<40x144xbf16>
    %c2 = arith.constant 2 : index
    %c0_16 = arith.constant 0 : index
    %c0_17 = arith.constant 0 : index
    %20 = vector.load %arg2[%c2, %c0_16, %c0_17] : memref<3x144x128xbf16, #tpu.memory_space<vmem>>, vector<1x144x128xbf16>
    %21 = vector.shape_cast %20 : vector<1x144x128xbf16> to vector<144x128xbf16>
    %cst_18 = arith.constant dense<0.000000e+00> : vector<40x128xf32>
    %22 = tpu.matmul %19, %21, %cst_18 {dimension_numbers = #tpu.dot_dimension_numbers<[1], [0], [0], [1], [0, 0, 1, 1], [], []>} : vector<40x144xbf16>, vector<144x128xbf16>, vector<40x128xf32> -> vector<40x128xf32>
    %23 = arith.addf %18, %22 : vector<40x128xf32>
    %24 = vector.extract_strided_slice %23 {offsets = [0, 0], sizes = [16, 128], strides = [1, 1]} : vector<40x128xf32> to vector<16x128xf32>
    %25 = vector.extract_strided_slice %23 {offsets = [24, 0], sizes = [16, 128], strides = [1, 1]} : vector<40x128xf32> to vector<16x128xf32>
    %cst_19 = arith.constant 0.000000e+00 : f32
    %26 = vector.broadcast %cst_19 : f32 to vector<1x128xf32>
    %cst_20 = arith.constant dense<0.000000e+00> : vector<128xf32>
    %27 = vector.multi_reduction <add>, %24, %cst_20 [0] : vector<16x128xf32> to vector<128xf32>
    %28 = vector.shape_cast %27 : vector<128xf32> to vector<1x128xf32>
    %29 = arith.addf %26, %28 : vector<1x128xf32>
    %cst_21 = arith.constant dense<0.000000e+00> : vector<128xf32>
    %30 = vector.multi_reduction <add>, %25, %cst_21 [0] : vector<16x128xf32> to vector<128xf32>
    %31 = vector.shape_cast %30 : vector<128xf32> to vector<1x128xf32>
    %32 = arith.addf %29, %31 : vector<1x128xf32>
    %c8_i32 = arith.constant 8 : i32
    %33 = tpu.dynamic_rotate %32 by %c8_i32 dim 1 : vector<1x128xf32>, i32 -> vector<1x128xf32>
    %34 = arith.addf %32, %33 : vector<1x128xf32>
    %c16_i32 = arith.constant 16 : i32
    %35 = tpu.dynamic_rotate %32 by %c16_i32 dim 1 : vector<1x128xf32>, i32 -> vector<1x128xf32>
    %36 = arith.addf %34, %35 : vector<1x128xf32>
    %c24_i32 = arith.constant 24 : i32
    %37 = tpu.dynamic_rotate %32 by %c24_i32 dim 1 : vector<1x128xf32>, i32 -> vector<1x128xf32>
    %38 = arith.addf %36, %37 : vector<1x128xf32>
    %c32_i32 = arith.constant 32 : i32
    %39 = tpu.dynamic_rotate %32 by %c32_i32 dim 1 : vector<1x128xf32>, i32 -> vector<1x128xf32>
    %40 = arith.addf %38, %39 : vector<1x128xf32>
    %c40_i32 = arith.constant 40 : i32
    %41 = tpu.dynamic_rotate %32 by %c40_i32 dim 1 : vector<1x128xf32>, i32 -> vector<1x128xf32>
    %42 = arith.addf %40, %41 : vector<1x128xf32>
    %c48_i32 = arith.constant 48 : i32
    %43 = tpu.dynamic_rotate %32 by %c48_i32 dim 1 : vector<1x128xf32>, i32 -> vector<1x128xf32>
    %44 = arith.addf %42, %43 : vector<1x128xf32>
    %c56_i32 = arith.constant 56 : i32
    %45 = tpu.dynamic_rotate %32 by %c56_i32 dim 1 : vector<1x128xf32>, i32 -> vector<1x128xf32>
    %46 = arith.addf %44, %45 : vector<1x128xf32>
    %c64_i32 = arith.constant 64 : i32
    %47 = tpu.dynamic_rotate %32 by %c64_i32 dim 1 : vector<1x128xf32>, i32 -> vector<1x128xf32>
    %48 = arith.addf %46, %47 : vector<1x128xf32>
    %c72_i32 = arith.constant 72 : i32
    %49 = tpu.dynamic_rotate %32 by %c72_i32 dim 1 : vector<1x128xf32>, i32 -> vector<1x128xf32>
    %50 = arith.addf %48, %49 : vector<1x128xf32>
    %c80_i32 = arith.constant 80 : i32
    %51 = tpu.dynamic_rotate %32 by %c80_i32 dim 1 : vector<1x128xf32>, i32 -> vector<1x128xf32>
    %52 = arith.addf %50, %51 : vector<1x128xf32>
    %c88_i32 = arith.constant 88 : i32
    %53 = tpu.dynamic_rotate %32 by %c88_i32 dim 1 : vector<1x128xf32>, i32 -> vector<1x128xf32>
    %54 = arith.addf %52, %53 : vector<1x128xf32>
    %c96_i32 = arith.constant 96 : i32
    %55 = tpu.dynamic_rotate %32 by %c96_i32 dim 1 : vector<1x128xf32>, i32 -> vector<1x128xf32>
    %56 = arith.addf %54, %55 : vector<1x128xf32>
    %c104_i32 = arith.constant 104 : i32
    %57 = tpu.dynamic_rotate %32 by %c104_i32 dim 1 : vector<1x128xf32>, i32 -> vector<1x128xf32>
    %58 = arith.addf %56, %57 : vector<1x128xf32>
    %c112_i32 = arith.constant 112 : i32
    %59 = tpu.dynamic_rotate %32 by %c112_i32 dim 1 : vector<1x128xf32>, i32 -> vector<1x128xf32>
    %60 = arith.addf %58, %59 : vector<1x128xf32>
    %c120_i32 = arith.constant 120 : i32
    %61 = tpu.dynamic_rotate %32 by %c120_i32 dim 1 : vector<1x128xf32>, i32 -> vector<1x128xf32>
    %62 = arith.addf %60, %61 : vector<1x128xf32>
    %cst_22 = arith.constant 0.001953125 : f32
    %63 = vector.broadcast %cst_22 : f32 to vector<1x128xf32>
    %64 = arith.mulf %62, %63 : vector<1x128xf32>
    %cst_23 = arith.constant 0.000000e+00 : f32
    %65 = vector.broadcast %cst_23 : f32 to vector<1x128xf32>
    %66 = vector.broadcast %64 : vector<1x128xf32> to vector<16x128xf32>
    %67 = arith.subf %24, %66 : vector<16x128xf32>
    %68 = arith.mulf %67, %67 : vector<16x128xf32>
    %cst_24 = arith.constant dense<0.000000e+00> : vector<128xf32>
    %69 = vector.multi_reduction <add>, %68, %cst_24 [0] : vector<16x128xf32> to vector<128xf32>
    %70 = vector.shape_cast %69 : vector<128xf32> to vector<1x128xf32>
    %71 = arith.addf %65, %70 : vector<1x128xf32>
    %72 = vector.broadcast %64 : vector<1x128xf32> to vector<16x128xf32>
    %73 = arith.subf %25, %72 : vector<16x128xf32>
    %74 = arith.mulf %73, %73 : vector<16x128xf32>
    %cst_25 = arith.constant dense<0.000000e+00> : vector<128xf32>
    %75 = vector.multi_reduction <add>, %74, %cst_25 [0] : vector<16x128xf32> to vector<128xf32>
    %76 = vector.shape_cast %75 : vector<128xf32> to vector<1x128xf32>
    %77 = arith.addf %71, %76 : vector<1x128xf32>
    %c8_i32_26 = arith.constant 8 : i32
    %78 = tpu.dynamic_rotate %77 by %c8_i32_26 dim 1 : vector<1x128xf32>, i32 -> vector<1x128xf32>
    %79 = arith.addf %77, %78 : vector<1x128xf32>
    %c16_i32_27 = arith.constant 16 : i32
    %80 = tpu.dynamic_rotate %77 by %c16_i32_27 dim 1 : vector<1x128xf32>, i32 -> vector<1x128xf32>
    %81 = arith.addf %79, %80 : vector<1x128xf32>
    %c24_i32_28 = arith.constant 24 : i32
    %82 = tpu.dynamic_rotate %77 by %c24_i32_28 dim 1 : vector<1x128xf32>, i32 -> vector<1x128xf32>
    %83 = arith.addf %81, %82 : vector<1x128xf32>
    %c32_i32_29 = arith.constant 32 : i32
    %84 = tpu.dynamic_rotate %77 by %c32_i32_29 dim 1 : vector<1x128xf32>, i32 -> vector<1x128xf32>
    %85 = arith.addf %83, %84 : vector<1x128xf32>
    %c40_i32_30 = arith.constant 40 : i32
    %86 = tpu.dynamic_rotate %77 by %c40_i32_30 dim 1 : vector<1x128xf32>, i32 -> vector<1x128xf32>
    %87 = arith.addf %85, %86 : vector<1x128xf32>
    %c48_i32_31 = arith.constant 48 : i32
    %88 = tpu.dynamic_rotate %77 by %c48_i32_31 dim 1 : vector<1x128xf32>, i32 -> vector<1x128xf32>
    %89 = arith.addf %87, %88 : vector<1x128xf32>
    %c56_i32_32 = arith.constant 56 : i32
    %90 = tpu.dynamic_rotate %77 by %c56_i32_32 dim 1 : vector<1x128xf32>, i32 -> vector<1x128xf32>
    %91 = arith.addf %89, %90 : vector<1x128xf32>
    %c64_i32_33 = arith.constant 64 : i32
    %92 = tpu.dynamic_rotate %77 by %c64_i32_33 dim 1 : vector<1x128xf32>, i32 -> vector<1x128xf32>
    %93 = arith.addf %91, %92 : vector<1x128xf32>
    %c72_i32_34 = arith.constant 72 : i32
    %94 = tpu.dynamic_rotate %77 by %c72_i32_34 dim 1 : vector<1x128xf32>, i32 -> vector<1x128xf32>
    %95 = arith.addf %93, %94 : vector<1x128xf32>
    %c80_i32_35 = arith.constant 80 : i32
    %96 = tpu.dynamic_rotate %77 by %c80_i32_35 dim 1 : vector<1x128xf32>, i32 -> vector<1x128xf32>
    %97 = arith.addf %95, %96 : vector<1x128xf32>
    %c88_i32_36 = arith.constant 88 : i32
    %98 = tpu.dynamic_rotate %77 by %c88_i32_36 dim 1 : vector<1x128xf32>, i32 -> vector<1x128xf32>
    %99 = arith.addf %97, %98 : vector<1x128xf32>
    %c96_i32_37 = arith.constant 96 : i32
    %100 = tpu.dynamic_rotate %77 by %c96_i32_37 dim 1 : vector<1x128xf32>, i32 -> vector<1x128xf32>
    %101 = arith.addf %99, %100 : vector<1x128xf32>
    %c104_i32_38 = arith.constant 104 : i32
    %102 = tpu.dynamic_rotate %77 by %c104_i32_38 dim 1 : vector<1x128xf32>, i32 -> vector<1x128xf32>
    %103 = arith.addf %101, %102 : vector<1x128xf32>
    %c112_i32_39 = arith.constant 112 : i32
    %104 = tpu.dynamic_rotate %77 by %c112_i32_39 dim 1 : vector<1x128xf32>, i32 -> vector<1x128xf32>
    %105 = arith.addf %103, %104 : vector<1x128xf32>
    %c120_i32_40 = arith.constant 120 : i32
    %106 = tpu.dynamic_rotate %77 by %c120_i32_40 dim 1 : vector<1x128xf32>, i32 -> vector<1x128xf32>
    %107 = arith.addf %105, %106 : vector<1x128xf32>
    %cst_41 = arith.constant 0.001953125 : f32
    %108 = vector.broadcast %cst_41 : f32 to vector<1x128xf32>
    %109 = arith.mulf %107, %108 : vector<1x128xf32>
    %c0_42 = arith.constant 0 : index
    %c0_43 = arith.constant 0 : index
    %110 = vector.load %arg3[%c0_42, %c0_43] : memref<1x128xf32, #tpu.memory_space<vmem>>, vector<1x128xf32>
    %cst_44 = arith.constant 9.99999974E-6 : f32
    %111 = vector.broadcast %cst_44 : f32 to vector<1x128xf32>
    %112 = arith.addf %109, %111 : vector<1x128xf32>
    %113 = math.rsqrt %112 : vector<1x128xf32>
    %114 = arith.mulf %110, %113 : vector<1x128xf32>
    %c0_45 = arith.constant 0 : index
    %c0_46 = arith.constant 0 : index
    %115 = vector.load %arg4[%c0_45, %c0_46] : memref<1x128xf32, #tpu.memory_space<vmem>>, vector<1x128xf32>
    %116 = arith.mulf %64, %114 : vector<1x128xf32>
    %117 = arith.subf %115, %116 : vector<1x128xf32>
    %118 = vector.broadcast %114 : vector<1x128xf32> to vector<16x128xf32>
    %119 = arith.mulf %24, %118 : vector<16x128xf32>
    %120 = vector.broadcast %117 : vector<1x128xf32> to vector<16x128xf32>
    %121 = arith.addf %119, %120 : vector<16x128xf32>
    %cst_47 = arith.constant 0.000000e+00 : f32
    %122 = vector.broadcast %cst_47 : f32 to vector<16x128xf32>
    %123 = arith.maximumf %121, %122 : vector<16x128xf32>
    %c8_48 = arith.constant 8 : index
    %c0_49 = arith.constant 0 : index
    %124 = vector.load %arg9[%c8_48, %c0_49] : memref<56x144xf32, #tpu.memory_space<vmem>>, vector<16x128xf32>
    tpu.vector_store %arg9[%c8_48, %c0_49], %123 {strides = array<i32>} : memref<56x144xf32, #tpu.memory_space<vmem>>, vector<16x128xf32>,
    %125 = vector.broadcast %114 : vector<1x128xf32> to vector<16x128xf32>
    %126 = arith.mulf %25, %125 : vector<16x128xf32>
    %127 = vector.broadcast %117 : vector<1x128xf32> to vector<16x128xf32>
    %128 = arith.addf %126, %127 : vector<16x128xf32>
    %cst_50 = arith.constant 0.000000e+00 : f32
    %129 = vector.broadcast %cst_50 : f32 to vector<16x128xf32>
    %130 = arith.maximumf %128, %129 : vector<16x128xf32>
    %c32_51 = arith.constant 32 : index
    %c0_52 = arith.constant 0 : index
    %131 = vector.load %arg9[%c32_51, %c0_52] : memref<56x144xf32, #tpu.memory_space<vmem>>, vector<16x128xf32>
    tpu.vector_store %arg9[%c32_51, %c0_52], %130 {strides = array<i32>} : memref<56x144xf32, #tpu.memory_space<vmem>>, vector<16x128xf32>,
    %c0_53 = arith.constant 0 : index
    %c0_54 = arith.constant 0 : index
    %132 = vector.load %arg9[%c0_53, %c0_54] : memref<56x144xf32, #tpu.memory_space<vmem>>, vector<56x144xf32>
    %133 = arith.truncf %132 : vector<56x144xf32> to vector<56x144xbf16>
    %cst_55 = arith.constant 0.000000e+00 : f32
    %134 = vector.broadcast %cst_55 : f32 to vector<40x128xf32>
    %135 = vector.extract_strided_slice %133 {offsets = [7, 0], sizes = [40, 144], strides = [1, 1]} : vector<56x144xbf16> to vector<40x144xbf16>
    %c0_56 = arith.constant 0 : index
    %c0_57 = arith.constant 0 : index
    %c0_58 = arith.constant 0 : index
    %136 = vector.load %arg5[%c0_56, %c0_57, %c0_58] : memref<3x144x128xbf16, #tpu.memory_space<vmem>>, vector<1x144x128xbf16>
    %137 = vector.shape_cast %136 : vector<1x144x128xbf16> to vector<144x128xbf16>
    %cst_59 = arith.constant dense<0.000000e+00> : vector<40x128xf32>
    %138 = tpu.matmul %135, %137, %cst_59 {dimension_numbers = #tpu.dot_dimension_numbers<[1], [0], [0], [1], [0, 0, 1, 1], [], []>} : vector<40x144xbf16>, vector<144x128xbf16>, vector<40x128xf32> -> vector<40x128xf32>
    %139 = arith.addf %134, %138 : vector<40x128xf32>
    %140 = vector.extract_strided_slice %133 {offsets = [8, 0], sizes = [40, 144], strides = [1, 1]} : vector<56x144xbf16> to vector<40x144xbf16>
    %c1_60 = arith.constant 1 : index
    %c0_61 = arith.constant 0 : index
    %c0_62 = arith.constant 0 : index
    %141 = vector.load %arg5[%c1_60, %c0_61, %c0_62] : memref<3x144x128xbf16, #tpu.memory_space<vmem>>, vector<1x144x128xbf16>
    %142 = vector.shape_cast %141 : vector<1x144x128xbf16> to vector<144x128xbf16>
    %cst_63 = arith.constant dense<0.000000e+00> : vector<40x128xf32>
    %143 = tpu.matmul %140, %142, %cst_63 {dimension_numbers = #tpu.dot_dimension_numbers<[1], [0], [0], [1], [0, 0, 1, 1], [], []>} : vector<40x144xbf16>, vector<144x128xbf16>, vector<40x128xf32> -> vector<40x128xf32>
    %144 = arith.addf %139, %143 : vector<40x128xf32>
    %145 = vector.extract_strided_slice %133 {offsets = [9, 0], sizes = [40, 144], strides = [1, 1]} : vector<56x144xbf16> to vector<40x144xbf16>
    %c2_64 = arith.constant 2 : index
    %c0_65 = arith.constant 0 : index
    %c0_66 = arith.constant 0 : index
    %146 = vector.load %arg5[%c2_64, %c0_65, %c0_66] : memref<3x144x128xbf16, #tpu.memory_space<vmem>>, vector<1x144x128xbf16>
    %147 = vector.shape_cast %146 : vector<1x144x128xbf16> to vector<144x128xbf16>
    %cst_67 = arith.constant dense<0.000000e+00> : vector<40x128xf32>
    %148 = tpu.matmul %145, %147, %cst_67 {dimension_numbers = #tpu.dot_dimension_numbers<[1], [0], [0], [1], [0, 0, 1, 1], [], []>} : vector<40x144xbf16>, vector<144x128xbf16>, vector<40x128xf32> -> vector<40x128xf32>
    %149 = arith.addf %144, %148 : vector<40x128xf32>
    %150 = vector.extract_strided_slice %149 {offsets = [0, 0], sizes = [16, 128], strides = [1, 1]} : vector<40x128xf32> to vector<16x128xf32>
    %151 = vector.extract_strided_slice %149 {offsets = [24, 0], sizes = [16, 128], strides = [1, 1]} : vector<40x128xf32> to vector<16x128xf32>
    %cst_68 = arith.constant 0.000000e+00 : f32
    %152 = vector.broadcast %cst_68 : f32 to vector<1x128xf32>
    %cst_69 = arith.constant dense<0.000000e+00> : vector<128xf32>
    %153 = vector.multi_reduction <add>, %150, %cst_69 [0] : vector<16x128xf32> to vector<128xf32>
    %154 = vector.shape_cast %153 : vector<128xf32> to vector<1x128xf32>
    %155 = arith.addf %152, %154 : vector<1x128xf32>
    %cst_70 = arith.constant dense<0.000000e+00> : vector<128xf32>
    %156 = vector.multi_reduction <add>, %151, %cst_70 [0] : vector<16x128xf32> to vector<128xf32>
    %157 = vector.shape_cast %156 : vector<128xf32> to vector<1x128xf32>
    %158 = arith.addf %155, %157 : vector<1x128xf32>
    %c8_i32_71 = arith.constant 8 : i32
    %159 = tpu.dynamic_rotate %158 by %c8_i32_71 dim 1 : vector<1x128xf32>, i32 -> vector<1x128xf32>
    %160 = arith.addf %158, %159 : vector<1x128xf32>
    %c16_i32_72 = arith.constant 16 : i32
    %161 = tpu.dynamic_rotate %158 by %c16_i32_72 dim 1 : vector<1x128xf32>, i32 -> vector<1x128xf32>
    %162 = arith.addf %160, %161 : vector<1x128xf32>
    %c24_i32_73 = arith.constant 24 : i32
    %163 = tpu.dynamic_rotate %158 by %c24_i32_73 dim 1 : vector<1x128xf32>, i32 -> vector<1x128xf32>
    %164 = arith.addf %162, %163 : vector<1x128xf32>
    %c32_i32_74 = arith.constant 32 : i32
    %165 = tpu.dynamic_rotate %158 by %c32_i32_74 dim 1 : vector<1x128xf32>, i32 -> vector<1x128xf32>
    %166 = arith.addf %164, %165 : vector<1x128xf32>
    %c40_i32_75 = arith.constant 40 : i32
    %167 = tpu.dynamic_rotate %158 by %c40_i32_75 dim 1 : vector<1x128xf32>, i32 -> vector<1x128xf32>
    %168 = arith.addf %166, %167 : vector<1x128xf32>
    %c48_i32_76 = arith.constant 48 : i32
    %169 = tpu.dynamic_rotate %158 by %c48_i32_76 dim 1 : vector<1x128xf32>, i32 -> vector<1x128xf32>
    %170 = arith.addf %168, %169 : vector<1x128xf32>
    %c56_i32_77 = arith.constant 56 : i32
    %171 = tpu.dynamic_rotate %158 by %c56_i32_77 dim 1 : vector<1x128xf32>, i32 -> vector<1x128xf32>
    %172 = arith.addf %170, %171 : vector<1x128xf32>
    %c64_i32_78 = arith.constant 64 : i32
    %173 = tpu.dynamic_rotate %158 by %c64_i32_78 dim 1 : vector<1x128xf32>, i32 -> vector<1x128xf32>
    %174 = arith.addf %172, %173 : vector<1x128xf32>
    %c72_i32_79 = arith.constant 72 : i32
    %175 = tpu.dynamic_rotate %158 by %c72_i32_79 dim 1 : vector<1x128xf32>, i32 -> vector<1x128xf32>
    %176 = arith.addf %174, %175 : vector<1x128xf32>
    %c80_i32_80 = arith.constant 80 : i32
    %177 = tpu.dynamic_rotate %158 by %c80_i32_80 dim 1 : vector<1x128xf32>, i32 -> vector<1x128xf32>
    %178 = arith.addf %176, %177 : vector<1x128xf32>
    %c88_i32_81 = arith.constant 88 : i32
    %179 = tpu.dynamic_rotate %158 by %c88_i32_81 dim 1 : vector<1x128xf32>, i32 -> vector<1x128xf32>
    %180 = arith.addf %178, %179 : vector<1x128xf32>
    %c96_i32_82 = arith.constant 96 : i32
    %181 = tpu.dynamic_rotate %158 by %c96_i32_82 dim 1 : vector<1x128xf32>, i32 -> vector<1x128xf32>
    %182 = arith.addf %180, %181 : vector<1x128xf32>
    %c104_i32_83 = arith.constant 104 : i32
    %183 = tpu.dynamic_rotate %158 by %c104_i32_83 dim 1 : vector<1x128xf32>, i32 -> vector<1x128xf32>
    %184 = arith.addf %182, %183 : vector<1x128xf32>
    %c112_i32_84 = arith.constant 112 : i32
    %185 = tpu.dynamic_rotate %158 by %c112_i32_84 dim 1 : vector<1x128xf32>, i32 -> vector<1x128xf32>
    %186 = arith.addf %184, %185 : vector<1x128xf32>
    %c120_i32_85 = arith.constant 120 : i32
    %187 = tpu.dynamic_rotate %158 by %c120_i32_85 dim 1 : vector<1x128xf32>, i32 -> vector<1x128xf32>
    %188 = arith.addf %186, %187 : vector<1x128xf32>
    %cst_86 = arith.constant 0.001953125 : f32
    %189 = vector.broadcast %cst_86 : f32 to vector<1x128xf32>
    %190 = arith.mulf %188, %189 : vector<1x128xf32>
    %cst_87 = arith.constant 0.000000e+00 : f32
    %191 = vector.broadcast %cst_87 : f32 to vector<1x128xf32>
    %192 = vector.broadcast %190 : vector<1x128xf32> to vector<16x128xf32>
    %193 = arith.subf %150, %192 : vector<16x128xf32>
    %194 = arith.mulf %193, %193 : vector<16x128xf32>
    %cst_88 = arith.constant dense<0.000000e+00> : vector<128xf32>
    %195 = vector.multi_reduction <add>, %194, %cst_88 [0] : vector<16x128xf32> to vector<128xf32>
    %196 = vector.shape_cast %195 : vector<128xf32> to vector<1x128xf32>
    %197 = arith.addf %191, %196 : vector<1x128xf32>
    %198 = vector.broadcast %190 : vector<1x128xf32> to vector<16x128xf32>
    %199 = arith.subf %151, %198 : vector<16x128xf32>
    %200 = arith.mulf %199, %199 : vector<16x128xf32>
    %cst_89 = arith.constant dense<0.000000e+00> : vector<128xf32>
    %201 = vector.multi_reduction <add>, %200, %cst_89 [0] : vector<16x128xf32> to vector<128xf32>
    %202 = vector.shape_cast %201 : vector<128xf32> to vector<1x128xf32>
    %203 = arith.addf %197, %202 : vector<1x128xf32>
    %c8_i32_90 = arith.constant 8 : i32
    %204 = tpu.dynamic_rotate %203 by %c8_i32_90 dim 1 : vector<1x128xf32>, i32 -> vector<1x128xf32>
    %205 = arith.addf %203, %204 : vector<1x128xf32>
    %c16_i32_91 = arith.constant 16 : i32
    %206 = tpu.dynamic_rotate %203 by %c16_i32_91 dim 1 : vector<1x128xf32>, i32 -> vector<1x128xf32>
    %207 = arith.addf %205, %206 : vector<1x128xf32>
    %c24_i32_92 = arith.constant 24 : i32
    %208 = tpu.dynamic_rotate %203 by %c24_i32_92 dim 1 : vector<1x128xf32>, i32 -> vector<1x128xf32>
    %209 = arith.addf %207, %208 : vector<1x128xf32>
    %c32_i32_93 = arith.constant 32 : i32
    %210 = tpu.dynamic_rotate %203 by %c32_i32_93 dim 1 : vector<1x128xf32>, i32 -> vector<1x128xf32>
    %211 = arith.addf %209, %210 : vector<1x128xf32>
    %c40_i32_94 = arith.constant 40 : i32
    %212 = tpu.dynamic_rotate %203 by %c40_i32_94 dim 1 : vector<1x128xf32>, i32 -> vector<1x128xf32>
    %213 = arith.addf %211, %212 : vector<1x128xf32>
    %c48_i32_95 = arith.constant 48 : i32
    %214 = tpu.dynamic_rotate %203 by %c48_i32_95 dim 1 : vector<1x128xf32>, i32 -> vector<1x128xf32>
    %215 = arith.addf %213, %214 : vector<1x128xf32>
    %c56_i32_96 = arith.constant 56 : i32
    %216 = tpu.dynamic_rotate %203 by %c56_i32_96 dim 1 : vector<1x128xf32>, i32 -> vector<1x128xf32>
    %217 = arith.addf %215, %216 : vector<1x128xf32>
    %c64_i32_97 = arith.constant 64 : i32
    %218 = tpu.dynamic_rotate %203 by %c64_i32_97 dim 1 : vector<1x128xf32>, i32 -> vector<1x128xf32>
    %219 = arith.addf %217, %218 : vector<1x128xf32>
    %c72_i32_98 = arith.constant 72 : i32
    %220 = tpu.dynamic_rotate %203 by %c72_i32_98 dim 1 : vector<1x128xf32>, i32 -> vector<1x128xf32>
    %221 = arith.addf %219, %220 : vector<1x128xf32>
    %c80_i32_99 = arith.constant 80 : i32
    %222 = tpu.dynamic_rotate %203 by %c80_i32_99 dim 1 : vector<1x128xf32>, i32 -> vector<1x128xf32>
    %223 = arith.addf %221, %222 : vector<1x128xf32>
    %c88_i32_100 = arith.constant 88 : i32
    %224 = tpu.dynamic_rotate %203 by %c88_i32_100 dim 1 : vector<1x128xf32>, i32 -> vector<1x128xf32>
    %225 = arith.addf %223, %224 : vector<1x128xf32>
    %c96_i32_101 = arith.constant 96 : i32
    %226 = tpu.dynamic_rotate %203 by %c96_i32_101 dim 1 : vector<1x128xf32>, i32 -> vector<1x128xf32>
    %227 = arith.addf %225, %226 : vector<1x128xf32>
    %c104_i32_102 = arith.constant 104 : i32
    %228 = tpu.dynamic_rotate %203 by %c104_i32_102 dim 1 : vector<1x128xf32>, i32 -> vector<1x128xf32>
    %229 = arith.addf %227, %228 : vector<1x128xf32>
    %c112_i32_103 = arith.constant 112 : i32
    %230 = tpu.dynamic_rotate %203 by %c112_i32_103 dim 1 : vector<1x128xf32>, i32 -> vector<1x128xf32>
    %231 = arith.addf %229, %230 : vector<1x128xf32>
    %c120_i32_104 = arith.constant 120 : i32
    %232 = tpu.dynamic_rotate %203 by %c120_i32_104 dim 1 : vector<1x128xf32>, i32 -> vector<1x128xf32>
    %233 = arith.addf %231, %232 : vector<1x128xf32>
    %cst_105 = arith.constant 0.001953125 : f32
    %234 = vector.broadcast %cst_105 : f32 to vector<1x128xf32>
    %235 = arith.mulf %233, %234 : vector<1x128xf32>
    %c0_106 = arith.constant 0 : index
    %c0_107 = arith.constant 0 : index
    %236 = vector.load %arg6[%c0_106, %c0_107] : memref<1x128xf32, #tpu.memory_space<vmem>>, vector<1x128xf32>
    %cst_108 = arith.constant 9.99999974E-6 : f32
    %237 = vector.broadcast %cst_108 : f32 to vector<1x128xf32>
    %238 = arith.addf %235, %237 : vector<1x128xf32>
    %239 = math.rsqrt %238 : vector<1x128xf32>
    %240 = arith.mulf %236, %239 : vector<1x128xf32>
    %c0_109 = arith.constant 0 : index
    %c0_110 = arith.constant 0 : index
    %241 = vector.load %arg7[%c0_109, %c0_110] : memref<1x128xf32, #tpu.memory_space<vmem>>, vector<1x128xf32>
    %242 = arith.mulf %190, %240 : vector<1x128xf32>
    %243 = arith.subf %241, %242 : vector<1x128xf32>
    %244 = vector.broadcast %240 : vector<1x128xf32> to vector<16x128xf32>
    %245 = arith.mulf %150, %244 : vector<16x128xf32>
    %246 = vector.broadcast %243 : vector<1x128xf32> to vector<16x128xf32>
    %247 = arith.addf %245, %246 : vector<16x128xf32>
    %c0_111 = arith.constant 0 : index
    %c0_112 = arith.constant 0 : index
    %248 = vector.load %arg1[%c0_111, %c0_112] : memref<32x128xf32, #tpu.memory_space<vmem>>, vector<16x128xf32>
    %249 = arith.addf %247, %248 : vector<16x128xf32>
    %cst_113 = arith.constant 0.000000e+00 : f32
    %250 = vector.broadcast %cst_113 : f32 to vector<16x128xf32>
    %251 = arith.maximumf %249, %250 : vector<16x128xf32>
    %c0_114 = arith.constant 0 : index
    %c0_115 = arith.constant 0 : index
    %252 = vector.load %arg8[%c0_114, %c0_115] : memref<32x128xf32, #tpu.memory_space<vmem>>, vector<16x128xf32>
    tpu.vector_store %arg8[%c0_114, %c0_115], %251 {strides = array<i32>} : memref<32x128xf32, #tpu.memory_space<vmem>>, vector<16x128xf32>,
    %253 = vector.broadcast %240 : vector<1x128xf32> to vector<16x128xf32>
    %254 = arith.mulf %151, %253 : vector<16x128xf32>
    %255 = vector.broadcast %243 : vector<1x128xf32> to vector<16x128xf32>
    %256 = arith.addf %254, %255 : vector<16x128xf32>
    %c16_116 = arith.constant 16 : index
    %c0_117 = arith.constant 0 : index
    %257 = vector.load %arg1[%c16_116, %c0_117] : memref<32x128xf32, #tpu.memory_space<vmem>>, vector<16x128xf32>
    %258 = arith.addf %256, %257 : vector<16x128xf32>
    %cst_118 = arith.constant 0.000000e+00 : f32
    %259 = vector.broadcast %cst_118 : f32 to vector<16x128xf32>
    %260 = arith.maximumf %258, %259 : vector<16x128xf32>
    %c16_119 = arith.constant 16 : index
    %c0_120 = arith.constant 0 : index
    %261 = vector.load %arg8[%c16_119, %c0_120] : memref<32x128xf32, #tpu.memory_space<vmem>>, vector<16x128xf32>
    tpu.vector_store %arg8[%c16_119, %c0_120], %260 {strides = array<i32>} : memref<32x128xf32, #tpu.memory_space<vmem>>, vector<16x128xf32>,
    return
  }
  func.func @transform_0(%arg0: i32) -> (i32, i32) {
    %c0_i32 = arith.constant 0 : i32
    %c0_i32_0 = arith.constant 0 : i32
    %c0_i32_1 = arith.constant 0 : i32
    return %c0_i32, %c0_i32_0 : i32, i32
  }
  func.func @transform_1(%arg0: i32) -> (i32, i32, i32) {
    %c0_i32 = arith.constant 0 : i32
    %c0_i32_0 = arith.constant 0 : i32
    %c0_i32_1 = arith.constant 0 : i32
    %c0_i32_2 = arith.constant 0 : i32
    return %c0_i32, %c0_i32_0, %c0_i32_1 : i32, i32, i32
  }
  func.func @transform_2(%arg0: i32) -> (i32, i32) {
    %c0_i32 = arith.constant 0 : i32
    %c0_i32_0 = arith.constant 0 : i32
    %c0_i32_1 = arith.constant 0 : i32
    return %c0_i32, %c0_i32_0 : i32, i32
  }
  func.func @transform_3(%arg0: i32) -> (i32, i32) {
    %c0_i32 = arith.constant 0 : i32
    %c0_i32_0 = arith.constant 0 : i32
    %c0_i32_1 = arith.constant 0 : i32
    return %c0_i32, %c0_i32_0 : i32, i32
  }
  func.func @transform_4(%arg0: i32) -> (i32, i32, i32) {
    %c0_i32 = arith.constant 0 : i32
    %c0_i32_0 = arith.constant 0 : i32
    %c0_i32_1 = arith.constant 0 : i32
    %c0_i32_2 = arith.constant 0 : i32
    return %c0_i32, %c0_i32_0, %c0_i32_1 : i32, i32, i32
  }
  func.func @transform_5(%arg0: i32) -> (i32, i32) {
    %c0_i32 = arith.constant 0 : i32
    %c0_i32_0 = arith.constant 0 : i32
    %c0_i32_1 = arith.constant 0 : i32
    return %c0_i32, %c0_i32_0 : i32, i32
  }
  func.func @transform_6(%arg0: i32) -> (i32, i32) {
    %c0_i32 = arith.constant 0 : i32
    %c0_i32_0 = arith.constant 0 : i32
    %c0_i32_1 = arith.constant 0 : i32
    return %c0_i32, %c0_i32_0 : i32, i32
  }
  func.func @transform_7(%arg0: i32) -> (i32, i32) {
    %c0_i32 = arith.constant 0 : i32
    %c0_i32_0 = arith.constant 0 : i32
    %c0_i32_1 = arith.constant 0 : i32
    return %c0_i32, %c0_i32_0 : i32, i32
  }
}

</mosaic_0001>

<llo_original>
// kernel: basic_block_forward.1
$region0: #{basic_block_forward.1}
  #allocation0 [shape = 'u32[]', space=smem, size = 0x4, offset = 0x4, fixed_abs, tag = 'smem constant byte address 0x4 - core index']
  #allocation1 [shape = 'u32[72,128]{1,0:T(1,128)}', space=vmem, size = 0x9000, scoped, tag = 'internal scratch']
  #allocation2 [shape = 'f32[56,144]{1,0:T(8,128)}', space=vmem, size = 0xe000, scoped, tag = 'scratch operand']
  %s0 = inlined_call_operand.vmem [shape: f32[32,128], index: 0, kind: input, shape index: {}]
  %s1 = inlined_call_operand.vmem [shape: bf16[3,144,128], index: 1, kind: input, shape index: {}]
  %s2 = inlined_call_operand.vmem [shape: f32[1,128], index: 2, kind: input, shape index: {}]
  %s3 = inlined_call_operand.vmem [shape: f32[1,128], index: 3, kind: input, shape index: {}]
  %s4 = inlined_call_operand.vmem [shape: bf16[3,144,128], index: 4, kind: input, shape index: {}]
  %s5 = inlined_call_operand.vmem [shape: f32[1,128], index: 5, kind: input, shape index: {}]
  %s6 = inlined_call_operand.vmem [shape: f32[1,128], index: 6, kind: input, shape index: {}]
  %s7 = inlined_call_operand.vmem [shape: f32[32,128], index: 7, kind: output, shape index: {}]
  %s8 = sld [smem:[#allocation0]]
  $region38: #{basic_block_forward.1} parent=0
    _
  %s10 = ssub.s32 1, %s8
  %s11 = scalar_select 0, %s10, %s8
  // Predicated region
  $region2: #{basic_block_forward.1} parent=0 // pred_check
    _
  $region3: #{basic_block_forward.1} parent=0 // pred_check_branch
    %13 = sbr.rel (0) target = $region5
  $region4: #{basic_block_forward.1} parent=0 // pred_region
    _
  $region5: #{basic_block_forward.1} parent=0 // pred_fallthru
    _
  // Predicated region
  $region6: #{basic_block_forward.1} parent=0 // pred_check
    _
  $region7: #{basic_block_forward.1} parent=0 // pred_check_branch
    %15 = sbr.rel (0) target = $region9
  $region8: #{basic_block_forward.1} parent=0 // pred_region
    _
  $region9: #{basic_block_forward.1} parent=0 // pred_fallthru
    _
  // Predicated region
  $region10: #{basic_block_forward.1} parent=0 // pred_check
    _
  $region11: #{basic_block_forward.1} parent=0 // pred_check_branch
    %17 = sbr.rel (0) target = $region13
  $region12: #{basic_block_forward.1} parent=0 // pred_region
    _
  $region13: #{basic_block_forward.1} parent=0 // pred_fallthru
    _
  // Predicated region
  $region14: #{basic_block_forward.1} parent=0 // pred_check
    _
  $region15: #{basic_block_forward.1} parent=0 // pred_check_branch
    %19 = sbr.rel (0) target = $region17
  $region16: #{basic_block_forward.1} parent=0 // pred_region
    _
  $region17: #{basic_block_forward.1} parent=0 // pred_fallthru
    _
  // Predicated region
  $region18: #{basic_block_forward.1} parent=0 // pred_check
    _
  $region19: #{basic_block_forward.1} parent=0 // pred_check_branch
    %21 = sbr.rel (0) target = $region21
  $region20: #{basic_block_forward.1} parent=0 // pred_region
    _
  $region21: #{basic_block_forward.1} parent=0 // pred_fallthru
    _
  // Predicated region
  $region22: #{basic_block_forward.1} parent=0 // pred_check
    _
  $region23: #{basic_block_forward.1} parent=0 // pred_check_branch
    %23 = sbr.rel (0) target = $region25
  $region24: #{basic_block_forward.1} parent=0 // pred_region
    _
  $region25: #{basic_block_forward.1} parent=0 // pred_fallthru
    _
  // Predicated region
  $region26: #{basic_block_forward.1} parent=0 // pred_check
    _
  $region27: #{basic_block_forward.1} parent=0 // pred_check_branch
    %25 = sbr.rel (0) target = $region29
  $region28: #{basic_block_forward.1} parent=0 // pred_region
    _
  $region29: #{basic_block_forward.1} parent=0 // pred_fallthru
    _
  %27 = vst [vmem:[#allocation2] sm:$0xff] 0.0
  %vm28 = vcmask 130048
  %29 = vst.msk [vmem:[#allocation2 + $0x8] sm:$0xff] %vm28, 0.0
  %30 = vst [vmem:[#allocation2 + $0x10] sm:$0xff] 0.0
  %31 = vst.msk [vmem:[#allocation2 + $0x18] sm:$0xff] %vm28, 0.0
  %32 = vst [vmem:[#allocation2 + $0x20] sm:$0xff] 0.0
  %33 = vst.msk [vmem:[#allocation2 + $0x28] sm:$0xff] %vm28, 0.0
  %34 = vst [vmem:[#allocation2 + $0x30] sm:$0xff] 0.0
  %35 = vst.msk [vmem:[#allocation2 + $0x38] sm:$0xff] %vm28, 0.0
  %36 = vst [vmem:[#allocation2 + $0x40] sm:$0xff] 0.0
  %37 = vst.msk [vmem:[#allocation2 + $0x48] sm:$0xff] %vm28, 0.0
  %38 = vst [vmem:[#allocation2 + $0x50] sm:$0xff] 0.0
  %39 = vst.msk [vmem:[#allocation2 + $0x58] sm:$0xff] %vm28, 0.0
  %40 = vst [vmem:[#allocation2 + $0x60] sm:$0xff] 0.0
  %41 = vst.msk [vmem:[#allocation2 + $0x68] sm:$0xff] %vm28, 0.0
  %v42 = vld [vmem:[%s0] sm:$0xff]
  %v43 = vld [vmem:[%s0 + $0x8] sm:$0xff]
  %44 = vst [vmem:[#allocation2 + $0x10] sm:$0xff] %v42
  %45 = vst [vmem:[#allocation2 + $0x20] sm:$0xff] %v43
  %v46 = vld [vmem:[%s0 + $0x10] sm:$0xff]
  %v47 = vld [vmem:[%s0 + $0x18] sm:$0xff]
  %48 = vst [vmem:[#allocation2 + $0x40] sm:$0xff] %v46
  %49 = vst [vmem:[#allocation2 + $0x50] sm:$0xff] %v47
  %v50 = vld [vmem:[#allocation2] sm:$0xff]
  %v51 = vld [vmem:[#allocation2 + $0x8] sm:$0xff]
  %v52 = vld [vmem:[#allocation2 + $0x10] sm:$0xff]
  %v53 = vld [vmem:[#allocation2 + $0x18] sm:$0xff]
  %v54 = vld [vmem:[#allocation2 + $0x20] sm:$0xff]
  %v55 = vld [vmem:[#allocation2 + $0x28] sm:$0xff]
  %v56 = vld [vmem:[#allocation2 + $0x30] sm:$0xff]
  %v57 = vld [vmem:[#allocation2 + $0x38] sm:$0xff]
  %v58 = vld [vmem:[#allocation2 + $0x40] sm:$0xff]
  %v59 = vld [vmem:[#allocation2 + $0x48] sm:$0xff]
  %v60 = vld [vmem:[#allocation2 + $0x50] sm:$0xff]
  %v61 = vld [vmem:[#allocation2 + $0x58] sm:$0xff]
  %v62 = vld [vmem:[#allocation2 + $0x60] sm:$0xff]
  %v63 = vld [vmem:[#allocation2 + $0x68] sm:$0xff]
  %v64 = vpack.c.bf16 %v51, %v50
  %v65 = vpack.c.bf16 %v53, %v52
  %v66 = vpack.c.bf16 %v55, %v54
  %v67 = vpack.c.bf16 %v57, %v56
  %v68 = vpack.c.bf16 %v59, %v58
  %v69 = vpack.c.bf16 %v61, %v60
  %v70 = vpack.c.bf16 %v63, %v62
  %v71 = vld [vmem:[%s1] sm:$0xf]
  %v72 = vld [vmem:[%s1 + $0x4] sm:$0xf]
  %v73 = vld [vmem:[%s1 + $0x8] sm:$0xf]
  %v74 = vld [vmem:[%s1 + $0xc] sm:$0xf]
  %v75 = vld [vmem:[%s1 + $0x10] sm:$0xf]
  %v76 = vld [vmem:[%s1 + $0x14] sm:$0xf]
  %v77 = vld [vmem:[%s1 + $0x18] sm:$0xf]
  %v78 = vld [vmem:[%s1 + $0x1c] sm:$0xf]
  %v79 = vld [vmem:[%s1 + $0x20] sm:$0xf]
  %v80 = vld [vmem:[%s1 + $0x24] sm:$0xf]
  %v81 = vld [vmem:[%s1 + $0x28] sm:$0xf]
  %v82 = vld [vmem:[%s1 + $0x2c] sm:$0xf]
  %v83 = vld [vmem:[%s1 + $0x30] sm:$0xf]
  %v84 = vld [vmem:[%s1 + $0x34] sm:$0xf]
  %v85 = vld [vmem:[%s1 + $0x38] sm:$0xf]
  %v86 = vld [vmem:[%s1 + $0x3c] sm:$0xf]
  %v87 = vld [vmem:[%s1 + $0x40] sm:$0xf]
  %v88 = vld [vmem:[%s1 + $0x44] sm:$0xf]
  %s89 = scalar_lea.vmem %s1, 72
  %v90 = vld [vmem:[%s89] sm:$0xf]
  %v91 = vld [vmem:[%s89 + $0x4] sm:$0xf]
  %v92 = vld [vmem:[%s89 + $0x8] sm:$0xf]
  %v93 = vld [vmem:[%s89 + $0xc] sm:$0xf]
  %v94 = vld [vmem:[%s89 + $0x10] sm:$0xf]
  %v95 = vld [vmem:[%s89 + $0x14] sm:$0xf]
  %v96 = vld [vmem:[%s89 + $0x18] sm:$0xf]
  %v97 = vld [vmem:[%s89 + $0x1c] sm:$0xf]
  %v98 = vld [vmem:[%s89 + $0x20] sm:$0xf]
  %v99 = vld [vmem:[%s89 + $0x24] sm:$0xf]
  %v100 = vld [vmem:[%s89 + $0x28] sm:$0xf]
  %v101 = vld [vmem:[%s89 + $0x2c] sm:$0xf]
  %v102 = vld [vmem:[%s89 + $0x30] sm:$0xf]
  %v103 = vld [vmem:[%s89 + $0x34] sm:$0xf]
  %v104 = vld [vmem:[%s89 + $0x38] sm:$0xf]
  %v105 = vld [vmem:[%s89 + $0x3c] sm:$0xf]
  %v106 = vld [vmem:[%s89 + $0x40] sm:$0xf]
  %v107 = vld [vmem:[%s89 + $0x44] sm:$0xf]
  %v113 = vunpack.c.l.b16 %v65
  %v114 = vunpack.c.h.b16 %v65
  %v115 = vunpack.c.l.b16 %v66
  %v116 = vunpack.c.h.b16 %v66
  %v117 = vunpack.c.l.b16 %v67
  %v118 = vunpack.c.h.b16 %v67
  %v119 = vunpack.c.l.b16 %v68
  %v120 = vunpack.c.h.b16 %v68
  %v121 = vunpack.c.l.b16 %v69
  %v122 = vunpack.c.h.b16 %v69
  %v123 = vpack.c.b16 %v115, %v113
  %v124 = vpack.c.b16 %v116, %v114
  %v125 = vpack.c.b16 %v119, %v117
  %v126 = vpack.c.b16 %v120, %v118
  %v127 = vpack.c.b16 %v121, %v121
  %v128 = vpack.c.b16 %v122, %v122
  %v150 = vunpack.c.l.b16 %v90
  %v151 = vunpack.c.l.b16 %v91
  %v152 = vunpack.c.l.b16 %v92
  %v153 = vunpack.c.l.b16 %v93
  %v154 = vunpack.c.l.b16 %v94
  %v155 = vunpack.c.l.b16 %v95
  %v156 = vunpack.c.l.b16 %v96
  %v157 = vunpack.c.l.b16 %v97
  %v158 = vunpack.c.l.b16 %v98
  %v159 = vunpack.c.l.b16 %v99
  %v160 = vunpack.c.l.b16 %v100
  %v161 = vunpack.c.l.b16 %v101
  %v162 = vunpack.c.l.b16 %v102
  %v163 = vunpack.c.l.b16 %v103
  %v164 = vunpack.c.l.b16 %v104
  %v165 = vunpack.c.l.b16 %v105
  %v166 = vunpack.c.l.b16 %v106
  %v167 = vunpack.c.l.b16 %v107
  %v168 = vpack.c.b16 %v151, %v150
  %v169 = vpack.c.b16 %v153, %v152
  %v170 = vpack.c.b16 %v155, %v154
  %v171 = vpack.c.b16 %v157, %v156
  %v172 = vpack.c.b16 %v159, %v158
  %v173 = vpack.c.b16 %v161, %v160
  %v174 = vpack.c.b16 %v163, %v162
  %v175 = vpack.c.b16 %v165, %v164
  %v176 = vpack.c.b16 %v167, %v166
  %v187 = vsel %vm28, %v124, 0
  %v190 = vsel %vm28, %v126, 0
  %v193 = vsel %vm28, %v128, 0
  %195 = vmatpush.bf16.msra.mxu0 %v175
  %196 = vmatpush.bf16.msra.mxu0 %v174
  %197 = vmatpush.bf16.msra.mxu0 %v173
  %198 = vmatpush.bf16.msra.mxu0 %v172
  %199 = vmatpush.bf16.msra.mxu0 %v171
  %200 = vmatpush.bf16.msra.mxu0 %v170
  %201 = vmatpush.bf16.msra.mxu0 %v169
  %202 = vmatpush.bf16.msra.mxu0 %v168
  %203 = vmatmul.bf16.gmra.mxu0 %v123
  %v204 = vpop.f32.mrf.mxu0
  %v205 = vadd.f32 0.0, %v204
  %v206 = vpop.f32.mrf.mxu0
  %v207 = vadd.f32 0.0, %v206
  %208 = vmatmul.bf16.gmra.mxu0 %v125
  %v209 = vpop.f32.mrf.mxu0
  %v210 = vpop.f32.mrf.mxu0
  %v211 = vadd.f32 0.0, %v210
  %212 = vmatmul.bf16.gmra.mxu0 %v127
  %v213 = vpop.f32.mrf.mxu0
  %v214 = vadd.f32 0.0, %v213
  %v215 = vpop.f32.mrf.mxu0
  %216 = vdwg.mxu0
  %217 = vmatpush.bf16.msra.mxu0 0
  %218 = vmatpush.bf16.msra.mxu0 0
  %219 = vmatpush.bf16.msra.mxu0 0
  %220 = vmatpush.bf16.msra.mxu0 0
  %221 = vmatpush.bf16.msra.mxu0 0
  %222 = vmatpush.bf16.msra.mxu0 0
  %223 = vmatpush.bf16.msra.mxu0 0
  %224 = vmatpush.bf16.msra.mxu0 %v176
  %225 = vmatmul.bf16.gmra.mxu0 %v187
  %v226 = vpop.f32.mrf.mxu0
  %v227 = vadd.f32 %v205, %v226
  %v228 = vpop.f32.mrf.mxu0
  %v229 = vadd.f32 %v207, %v228
  %230 = vmatmul.bf16.gmra.mxu0 %v190
  %v231 = vpop.f32.mrf.mxu0
  %v232 = vpop.f32.mrf.mxu0
  %v233 = vadd.f32 %v211, %v232
  %234 = vmatmul.bf16.gmra.mxu0 %v193
  %v235 = vpop.f32.mrf.mxu0
  %v236 = vadd.f32 %v214, %v235
  %v237 = vpop.f32.mrf.mxu0
  %238 = vdwg.mxu0
  %v240 = vunpack.c.l.b16 %v64
  %v241 = vunpack.c.h.b16 %v64
  %v242 = vpack.c.b16 %v113, %v240
  %v243 = vpack.c.b16 %v114, %v241
  %v244 = vpack.c.b16 %v117, %v115
  %v245 = vpack.c.b16 %v118, %v116
  %v246 = vpack.c.b16 %v121, %v119
  %v247 = vpack.c.b16 %v122, %v120
  %vm248 = vsmask.f32 4352
  %v250 = vshrl.u32 %v242, 16
  %v252 = vrot.slane %v250, 3
  %v253 = vshll.u32 %v242, 16
  %v255 = vrot.slane %v253, 4
  %v256 = vor.u32 %v252, %v255
  %v258 = vshrl.u32 %v244, 16
  %v260 = vrot.slane %v258, 3
  %v261 = vshll.u32 %v244, 16
  %v263 = vrot.slane %v261, 4
  %v264 = vor.u32 %v260, %v263
  %v265 = vsel %vm248, %v256, %v264
  %v267 = vshrl.u32 %v243, 16
  %v269 = vrot.slane %v267, 3
  %v270 = vshll.u32 %v243, 16
  %v272 = vrot.slane %v270, 4
  %v273 = vor.u32 %v269, %v272
  %v275 = vshrl.u32 %v245, 16
  %v277 = vrot.slane %v275, 3
  %v278 = vshll.u32 %v245, 16
  %v280 = vrot.slane %v278, 4
  %v281 = vor.u32 %v277, %v280
  %v282 = vsel %vm248, %v273, %v281
  %v284 = vshrl.u32 %v246, 16
  %v286 = vrot.slane %v284, 3
  %v287 = vshll.u32 %v246, 16
  %v289 = vrot.slane %v287, 4
  %v290 = vor.u32 %v286, %v289
  %v291 = vsel %vm248, %v264, %v290
  %v293 = vshrl.u32 %v247, 16
  %v295 = vrot.slane %v293, 3
  %v296 = vshll.u32 %v247, 16
  %v298 = vrot.slane %v296, 4
  %v299 = vor.u32 %v295, %v298
  %v300 = vsel %vm248, %v281, %v299
  %v322 = vunpack.c.l.b16 %v71
  %v323 = vunpack.c.l.b16 %v72
  %v324 = vunpack.c.l.b16 %v73
  %v325 = vunpack.c.l.b16 %v74
  %v326 = vunpack.c.l.b16 %v75
  %v327 = vunpack.c.l.b16 %v76
  %v328 = vunpack.c.l.b16 %v77
  %v329 = vunpack.c.l.b16 %v78
  %v330 = vunpack.c.l.b16 %v79
  %v331 = vunpack.c.l.b16 %v80
  %v332 = vunpack.c.l.b16 %v81
  %v333 = vunpack.c.l.b16 %v82
  %v334 = vunpack.c.l.b16 %v83
  %v335 = vunpack.c.l.b16 %v84
  %v336 = vunpack.c.l.b16 %v85
  %v337 = vunpack.c.l.b16 %v86
  %v338 = vunpack.c.l.b16 %v87
  %v339 = vunpack.c.l.b16 %v88
  %v340 = vpack.c.b16 %v323, %v322
  %v341 = vpack.c.b16 %v325, %v324
  %v342 = vpack.c.b16 %v327, %v326
  %v343 = vpack.c.b16 %v329, %v328
  %v344 = vpack.c.b16 %v331, %v330
  %v345 = vpack.c.b16 %v333, %v332
  %v346 = vpack.c.b16 %v335, %v334
  %v347 = vpack.c.b16 %v337, %v336
  %v348 = vpack.c.b16 %v339, %v338
  %v359 = vsel %vm28, %v282, 0
  %v362 = vsel %vm28, %v300, 0
  %v365 = vsel %vm28, %v299, 0
  %367 = vmatpush.bf16.msra.mxu0 %v347
  %368 = vmatpush.bf16.msra.mxu0 %v346
  %369 = vmatpush.bf16.msra.mxu0 %v345
  %370 = vmatpush.bf16.msra.mxu0 %v344
  %371 = vmatpush.bf16.msra.mxu0 %v343
  %372 = vmatpush.bf16.msra.mxu0 %v342
  %373 = vmatpush.bf16.msra.mxu0 %v341
  %374 = vmatpush.bf16.msra.mxu0 %v340
  %375 = vmatmul.bf16.gmra.mxu0 %v265
  %v376 = vpop.f32.mrf.mxu0
  %v377 = vadd.f32 %v227, %v376
  %v378 = vpop.f32.mrf.mxu0
  %v379 = vadd.f32 %v229, %v378
  %380 = vmatmul.bf16.gmra.mxu0 %v291
  %v381 = vpop.f32.mrf.mxu0
  %v382 = vpop.f32.mrf.mxu0
  %v383 = vadd.f32 %v233, %v382
  %384 = vmatmul.bf16.gmra.mxu0 %v290
  %v385 = vpop.f32.mrf.mxu0
  %v386 = vadd.f32 %v236, %v385
  %v387 = vpop.f32.mrf.mxu0
  %388 = vdwg.mxu0
  %389 = vmatpush.bf16.msra.mxu0 0
  %390 = vmatpush.bf16.msra.mxu0 0
  %391 = vmatpush.bf16.msra.mxu0 0
  %392 = vmatpush.bf16.msra.mxu0 0
  %393 = vmatpush.bf16.msra.mxu0 0
  %394 = vmatpush.bf16.msra.mxu0 0
  %395 = vmatpush.bf16.msra.mxu0 0
  %396 = vmatpush.bf16.msra.mxu0 %v348
  %397 = vmatmul.bf16.gmra.mxu0 %v359
  %v398 = vpop.f32.mrf.mxu0
  %v399 = vadd.f32 %v377, %v398
  %v400 = vpop.f32.mrf.mxu0
  %v401 = vadd.f32 %v379, %v400
  %402 = vmatmul.bf16.gmra.mxu0 %v362
  %v403 = vpop.f32.mrf.mxu0
  %v404 = vpop.f32.mrf.mxu0
  %v405 = vadd.f32 %v383, %v404
  %406 = vmatmul.bf16.gmra.mxu0 %v365
  %v407 = vpop.f32.mrf.mxu0
  %v408 = vadd.f32 %v386, %v407
  %v409 = vpop.f32.mrf.mxu0
  %410 = vdwg.mxu0
  %s411 = scalar_lea.vmem %s1, 144
  %v412 = vld [vmem:[%s411] sm:$0xf]
  %v413 = vld [vmem:[%s411 + $0x4] sm:$0xf]
  %v414 = vld [vmem:[%s411 + $0x8] sm:$0xf]
  %v415 = vld [vmem:[%s411 + $0xc] sm:$0xf]
  %v416 = vld [vmem:[%s411 + $0x10] sm:$0xf]
  %v417 = vld [vmem:[%s411 + $0x14] sm:$0xf]
  %v418 = vld [vmem:[%s411 + $0x18] sm:$0xf]
  %v419 = vld [vmem:[%s411 + $0x1c] sm:$0xf]
  %v420 = vld [vmem:[%s411 + $0x20] sm:$0xf]
  %v421 = vld [vmem:[%s411 + $0x24] sm:$0xf]
  %v422 = vld [vmem:[%s411 + $0x28] sm:$0xf]
  %v423 = vld [vmem:[%s411 + $0x2c] sm:$0xf]
  %v424 = vld [vmem:[%s411 + $0x30] sm:$0xf]
  %v425 = vld [vmem:[%s411 + $0x34] sm:$0xf]
  %v426 = vld [vmem:[%s411 + $0x38] sm:$0xf]
  %v427 = vld [vmem:[%s411 + $0x3c] sm:$0xf]
  %v428 = vld [vmem:[%s411 + $0x40] sm:$0xf]
  %v429 = vld [vmem:[%s411 + $0x44] sm:$0xf]
  %v431 = vunpack.c.l.b16 %v70
  %v432 = vunpack.c.h.b16 %v70
  %v433 = vpack.c.b16 %v431, %v121
  %v434 = vpack.c.b16 %v432, %v122
  %vm435 = vsmask.f32 7424
  %v437 = vshrl.u32 %v123, 16
  %v439 = vshll.u32 %v123, 16
  %v441 = vrot.slane %v439, 1
  %v442 = vor.u32 %v437, %v441
  %v444 = vshll.u32 %v125, 16
  %v446 = vrot.slane %v444, 1
  %v447 = vsel %vm435, %v442, %v446
  %v448 = vshrl.u32 %v124, 16
  %v450 = vshll.u32 %v124, 16
  %v452 = vrot.slane %v450, 1
  %v453 = vor.u32 %v448, %v452
  %v454 = vshll.u32 %v126, 16
  %v456 = vrot.slane %v454, 1
  %v457 = vsel %vm435, %v453, %v456
  %v458 = vshrl.u32 %v125, 16
  %v460 = vor.u32 %v458, %v446
  %v462 = vshll.u32 %v433, 16
  %v464 = vrot.slane %v462, 1
  %v465 = vsel %vm435, %v460, %v464
  %v466 = vshrl.u32 %v126, 16
  %v468 = vor.u32 %v466, %v456
  %v470 = vshll.u32 %v434, 16
  %v472 = vrot.slane %v470, 1
  %v473 = vsel %vm435, %v468, %v472
  %v474 = vshrl.u32 %v433, 16
  %v476 = vor.u32 %v474, %v464
  %v477 = vshrl.u32 %v434, 16
  %v479 = vor.u32 %v477, %v472
  %v501 = vunpack.c.l.b16 %v412
  %v502 = vunpack.c.l.b16 %v413
  %v503 = vunpack.c.l.b16 %v414
  %v504 = vunpack.c.l.b16 %v415
  %v505 = vunpack.c.l.b16 %v416
  %v506 = vunpack.c.l.b16 %v417
  %v507 = vunpack.c.l.b16 %v418
  %v508 = vunpack.c.l.b16 %v419
  %v509 = vunpack.c.l.b16 %v420
  %v510 = vunpack.c.l.b16 %v421
  %v511 = vunpack.c.l.b16 %v422
  %v512 = vunpack.c.l.b16 %v423
  %v513 = vunpack.c.l.b16 %v424
  %v514 = vunpack.c.l.b16 %v425
  %v515 = vunpack.c.l.b16 %v426
  %v516 = vunpack.c.l.b16 %v427
  %v517 = vunpack.c.l.b16 %v428
  %v518 = vunpack.c.l.b16 %v429
  %v519 = vpack.c.b16 %v502, %v501
  %v520 = vpack.c.b16 %v504, %v503
  %v521 = vpack.c.b16 %v506, %v505
  %v522 = vpack.c.b16 %v508, %v507
  %v523 = vpack.c.b16 %v510, %v509
  %v524 = vpack.c.b16 %v512, %v511
  %v525 = vpack.c.b16 %v514, %v513
  %v526 = vpack.c.b16 %v516, %v515
  %v527 = vpack.c.b16 %v518, %v517
  %v538 = vsel %vm28, %v457, 0
  %v541 = vsel %vm28, %v473, 0
  %v544 = vsel %vm28, %v479, 0
  %546 = vmatpush.bf16.msra.mxu0 %v526
  %547 = vmatpush.bf16.msra.mxu0 %v525
  %548 = vmatpush.bf16.msra.mxu0 %v524
  %549 = vmatpush.bf16.msra.mxu0 %v523
  %550 = vmatpush.bf16.msra.mxu0 %v522
  %551 = vmatpush.bf16.msra.mxu0 %v521
  %552 = vmatpush.bf16.msra.mxu0 %v520
  %553 = vmatpush.bf16.msra.mxu0 %v519
  %554 = vmatmul.bf16.gmra.mxu0 %v447
  %v555 = vpop.f32.mrf.mxu0
  %v556 = vadd.f32 0.0, %v555
  %v557 = vpop.f32.mrf.mxu0
  %v558 = vadd.f32 0.0, %v557
  %559 = vmatmul.bf16.gmra.mxu0 %v465
  %v560 = vpop.f32.mrf.mxu0
  %v561 = vpop.f32.mrf.mxu0
  %v562 = vadd.f32 0.0, %v561
  %563 = vmatmul.bf16.gmra.mxu0 %v476
  %v564 = vpop.f32.mrf.mxu0
  %v565 = vadd.f32 0.0, %v564
  %v566 = vpop.f32.mrf.mxu0
  %567 = vdwg.mxu0
  %568 = vmatpush.bf16.msra.mxu0 0
  %569 = vmatpush.bf16.msra.mxu0 0
  %570 = vmatpush.bf16.msra.mxu0 0
  %571 = vmatpush.bf16.msra.mxu0 0
  %572 = vmatpush.bf16.msra.mxu0 0
  %573 = vmatpush.bf16.msra.mxu0 0
  %574 = vmatpush.bf16.msra.mxu0 0
  %575 = vmatpush.bf16.msra.mxu0 %v527
  %576 = vmatmul.bf16.gmra.mxu0 %v538
  %v577 = vpop.f32.mrf.mxu0
  %v578 = vadd.f32 %v556, %v577
  %v579 = vpop.f32.mrf.mxu0
  %v580 = vadd.f32 %v558, %v579
  %581 = vmatmul.bf16.gmra.mxu0 %v541
  %v582 = vpop.f32.mrf.mxu0
  %v583 = vpop.f32.mrf.mxu0
  %v584 = vadd.f32 %v562, %v583
  %585 = vmatmul.bf16.gmra.mxu0 %v544
  %v586 = vpop.f32.mrf.mxu0
  %v587 = vadd.f32 %v565, %v586
  %v588 = vpop.f32.mrf.mxu0
  %589 = vdwg.mxu0
  %v590 = vadd.f32 %v399, %v578
  %v591 = vadd.f32 %v401, %v580
  %v592 = vadd.f32 %v405, %v584
  %v593 = vadd.f32 %v408, %v587
  %v594 = vadd.f32 %v590, %v591
  %v595 = vrot.slane %v594, 4
  %v596 = vadd.f32 %v594, %v595
  %v597 = vrot.slane %v596, 2
  %v598 = vadd.f32 %v596, %v597
  %v599 = vrot.slane %v598, 1
  %v600 = vadd.f32 %v598, %v599
  %v601 = vadd.f32 %v600, 0.0
  %v602 = vadd.f32 %v592, %v593
  %v603 = vrot.slane %v602, 4
  %v604 = vadd.f32 %v602, %v603
  %v605 = vrot.slane %v604, 2
  %v606 = vadd.f32 %v604, %v605
  %v607 = vrot.slane %v606, 1
  %v608 = vadd.f32 %v606, %v607
  %v609 = vadd.f32 %v601, %v608
  %610 = vrot.lane.b32.xlu0 %v609, 8
  %v611 = vpop.permute.xlu0 %610
  %v612 = vadd.f32 %v609, %v611
  %613 = vrot.lane.b32.xlu0 %v609, 16
  %v614 = vpop.permute.xlu0 %613
  %v615 = vadd.f32 %v612, %v614
  %616 = vrot.lane.b32.xlu0 %v609, 24
  %v617 = vpop.permute.xlu0 %616
  %v618 = vadd.f32 %v615, %v617
  %619 = vrot.lane.b32.xlu0 %v609, 32
  %v620 = vpop.permute.xlu0 %619
  %v621 = vadd.f32 %v618, %v620
  %622 = vrot.lane.b32.xlu0 %v609, 40
  %v623 = vpop.permute.xlu0 %622
  %v624 = vadd.f32 %v621, %v623
  %625 = vrot.lane.b32.xlu0 %v609, 48
  %v626 = vpop.permute.xlu0 %625
  %v627 = vadd.f32 %v624, %v626
  %628 = vrot.lane.b32.xlu0 %v609, 56
  %v629 = vpop.permute.xlu0 %628
  %v630 = vadd.f32 %v627, %v629
  %631 = vrot.lane.b32.xlu0 %v609, 64
  %v632 = vpop.permute.xlu0 %631
  %v633 = vadd.f32 %v630, %v632
  %634 = vrot.lane.b32.xlu0 %v609, 72
  %v635 = vpop.permute.xlu0 %634
  %v636 = vadd.f32 %v633, %v635
  %637 = vrot.lane.b32.xlu0 %v609, 80
  %v638 = vpop.permute.xlu0 %637
  %v639 = vadd.f32 %v636, %v638
  %640 = vrot.lane.b32.xlu0 %v609, 88
  %v641 = vpop.permute.xlu0 %640
  %v642 = vadd.f32 %v639, %v641
  %643 = vrot.lane.b32.xlu0 %v609, 96
  %v644 = vpop.permute.xlu0 %643
  %v645 = vadd.f32 %v642, %v644
  %646 = vrot.lane.b32.xlu0 %v609, 104
  %v647 = vpop.permute.xlu0 %646
  %v648 = vadd.f32 %v645, %v647
  %649 = vrot.lane.b32.xlu0 %v609, 112
  %v650 = vpop.permute.xlu0 %649
  %v651 = vadd.f32 %v648, %v650
  %652 = vrot.lane.b32.xlu0 %v609, 120
  %v653 = vpop.permute.xlu0 %652
  %v654 = vadd.f32 %v651, %v653
  %v655 = vmul.f32 %v654, 0.001953125
  %v656 = vperm.slane %v655, 0
  %v657 = vsub.f32 %v590, %v656
  %v658 = vsub.f32 %v591, %v656
  %v659 = vmul.f32 %v657, %v657
  %v660 = vmul.f32 %v658, %v658
  %v661 = vadd.f32 %v659, %v660
  %v662 = vrot.slane %v661, 4
  %v663 = vadd.f32 %v661, %v662
  %v664 = vrot.slane %v663, 2
  %v665 = vadd.f32 %v663, %v664
  %v666 = vrot.slane %v665, 1
  %v667 = vadd.f32 %v665, %v666
  %v668 = vadd.f32 %v667, 0.0
  %v669 = vsub.f32 %v592, %v656
  %v670 = vsub.f32 %v593, %v656
  %v671 = vmul.f32 %v669, %v669
  %v672 = vmul.f32 %v670, %v670
  %v673 = vadd.f32 %v671, %v672
  %v674 = vrot.slane %v673, 4
  %v675 = vadd.f32 %v673, %v674
  %v676 = vrot.slane %v675, 2
  %v677 = vadd.f32 %v675, %v676
  %v678 = vrot.slane %v677, 1
  %v679 = vadd.f32 %v677, %v678
  %v680 = vadd.f32 %v668, %v679
  %681 = vrot.lane.b32.xlu0 %v680, 8
  %v682 = vpop.permute.xlu0 %681
  %v683 = vadd.f32 %v680, %v682
  %684 = vrot.lane.b32.xlu0 %v680, 16
  %v685 = vpop.permute.xlu0 %684
  %v686 = vadd.f32 %v683, %v685
  %687 = vrot.lane.b32.xlu0 %v680, 24
  %v688 = vpop.permute.xlu0 %687
  %v689 = vadd.f32 %v686, %v688
  %690 = vrot.lane.b32.xlu0 %v680, 32
  %v691 = vpop.permute.xlu0 %690
  %v692 = vadd.f32 %v689, %v691
  %693 = vrot.lane.b32.xlu0 %v680, 40
  %v694 = vpop.permute.xlu0 %693
  %v695 = vadd.f32 %v692, %v694
  %696 = vrot.lane.b32.xlu0 %v680, 48
  %v697 = vpop.permute.xlu0 %696
  %v698 = vadd.f32 %v695, %v697
  %699 = vrot.lane.b32.xlu0 %v680, 56
  %v700 = vpop.permute.xlu0 %699
  %v701 = vadd.f32 %v698, %v700
  %702 = vrot.lane.b32.xlu0 %v680, 64
  %v703 = vpop.permute.xlu0 %702
  %v704 = vadd.f32 %v701, %v703
  %705 = vrot.lane.b32.xlu0 %v680, 72
  %v706 = vpop.permute.xlu0 %705
  %v707 = vadd.f32 %v704, %v706
  %708 = vrot.lane.b32.xlu0 %v680, 80
  %v709 = vpop.permute.xlu0 %708
  %v710 = vadd.f32 %v707, %v709
  %711 = vrot.lane.b32.xlu0 %v680, 88
  %v712 = vpop.permute.xlu0 %711
  %v713 = vadd.f32 %v710, %v712
  %714 = vrot.lane.b32.xlu0 %v680, 96
  %v715 = vpop.permute.xlu0 %714
  %v716 = vadd.f32 %v713, %v715
  %717 = vrot.lane.b32.xlu0 %v680, 104
  %v718 = vpop.permute.xlu0 %717
  %v719 = vadd.f32 %v716, %v718
  %720 = vrot.lane.b32.xlu0 %v680, 112
  %v721 = vpop.permute.xlu0 %720
  %v722 = vadd.f32 %v719, %v721
  %723 = vrot.lane.b32.xlu0 %v680, 120
  %v724 = vpop.permute.xlu0 %723
  %v725 = vadd.f32 %v722, %v724
  %v726 = vmul.f32 %v725, 0.001953125
  %v727 = vld [vmem:[%s2] sm:$0x1]
  %v728 = vadd.f32 %v726, 1e-05
  %v729 = vrsqrt.pop %v728
  %v730 = vmul.f32 %v729, %v728
  %v731 = vmul.f32 %v730, %v729
  %v732 = vmul.f32 0.5, %v731
  %v733 = vsub.f32 1.5, %v732
  %v734 = vmul.f32 %v729, %v733
  %vm735 = vweird.f32 %v728
  %vm736 = vweird.f32 %v729
  %vm737 = vmor %vm735, %vm736
  %v738 = vsel %vm737, %v729, %v734
  %v739 = vmul.f32 %v727, %v738
  %v740 = vld [vmem:[%s3] sm:$0x1]
  %v741 = vmul.f32 %v655, %v739
  %v742 = vsub.f32 %v740, %v741
  %v744 = vperm.slane %v739, 0
  %v746 = vmul.f32 %v590, %v744
  %v747 = vmul.f32 %v591, %v744
  %v749 = vperm.slane %v742, 0
  %v751 = vadd.f32 %v746, %v749
  %v752 = vadd.f32 %v747, %v749
  %v753 = vmax.f32 %v751, 0.0
  %v754 = vmax.f32 %v752, 0.0
  %755 = vst [vmem:[#allocation2 + $0x10] sm:$0xff] %v753
  %756 = vst [vmem:[#allocation2 + $0x20] sm:$0xff] %v754
  %v757 = vmul.f32 %v592, %v744
  %v758 = vmul.f32 %v593, %v744
  %v759 = vadd.f32 %v757, %v749
  %v760 = vadd.f32 %v758, %v749
  %v761 = vmax.f32 %v759, 0.0
  %v762 = vmax.f32 %v760, 0.0
  %763 = vst [vmem:[#allocation2 + $0x40] sm:$0xff] %v761
  %764 = vst [vmem:[#allocation2 + $0x50] sm:$0xff] %v762
  %v765 = vld [vmem:[#allocation2] sm:$0xff]
  %v766 = vld [vmem:[#allocation2 + $0x8] sm:$0xff]
  %v767 = vld [vmem:[#allocation2 + $0x10] sm:$0xff]
  %v768 = vld [vmem:[#allocation2 + $0x18] sm:$0xff]
  %v769 = vld [vmem:[#allocation2 + $0x20] sm:$0xff]
  %v770 = vld [vmem:[#allocation2 + $0x28] sm:$0xff]
  %v771 = vld [vmem:[#allocation2 + $0x30] sm:$0xff]
  %v772 = vld [vmem:[#allocation2 + $0x38] sm:$0xff]
  %v773 = vld [vmem:[#allocation2 + $0x40] sm:$0xff]
  %v774 = vld [vmem:[#allocation2 + $0x48] sm:$0xff]
  %v775 = vld [vmem:[#allocation2 + $0x50] sm:$0xff]
  %v776 = vld [vmem:[#allocation2 + $0x58] sm:$0xff]
  %v777 = vld [vmem:[#allocation2 + $0x60] sm:$0xff]
  %v778 = vld [vmem:[#allocation2 + $0x68] sm:$0xff]
  %v779 = vpack.c.bf16 %v766, %v765
  %v780 = vpack.c.bf16 %v768, %v767
  %v781 = vpack.c.bf16 %v770, %v769
  %v782 = vpack.c.bf16 %v772, %v771
  %v783 = vpack.c.bf16 %v774, %v773
  %v784 = vpack.c.bf16 %v776, %v775
  %v785 = vpack.c.bf16 %v778, %v777
  %v786 = vld [vmem:[%s4] sm:$0xf]
  %v787 = vld [vmem:[%s4 + $0x4] sm:$0xf]
  %v788 = vld [vmem:[%s4 + $0x8] sm:$0xf]
  %v789 = vld [vmem:[%s4 + $0xc] sm:$0xf]
  %v790 = vld [vmem:[%s4 + $0x10] sm:$0xf]
  %v791 = vld [vmem:[%s4 + $0x14] sm:$0xf]
  %v792 = vld [vmem:[%s4 + $0x18] sm:$0xf]
  %v793 = vld [vmem:[%s4 + $0x1c] sm:$0xf]
  %v794 = vld [vmem:[%s4 + $0x20] sm:$0xf]
  %v795 = vld [vmem:[%s4 + $0x24] sm:$0xf]
  %v796 = vld [vmem:[%s4 + $0x28] sm:$0xf]
  %v797 = vld [vmem:[%s4 + $0x2c] sm:$0xf]
  %v798 = vld [vmem:[%s4 + $0x30] sm:$0xf]
  %v799 = vld [vmem:[%s4 + $0x34] sm:$0xf]
  %v800 = vld [vmem:[%s4 + $0x38] sm:$0xf]
  %v801 = vld [vmem:[%s4 + $0x3c] sm:$0xf]
  %v802 = vld [vmem:[%s4 + $0x40] sm:$0xf]
  %v803 = vld [vmem:[%s4 + $0x44] sm:$0xf]
  %s804 = scalar_lea.vmem %s4, 72
  %v805 = vld [vmem:[%s804] sm:$0xf]
  %v806 = vld [vmem:[%s804 + $0x4] sm:$0xf]
  %v807 = vld [vmem:[%s804 + $0x8] sm:$0xf]
  %v808 = vld [vmem:[%s804 + $0xc] sm:$0xf]
  %v809 = vld [vmem:[%s804 + $0x10] sm:$0xf]
  %v810 = vld [vmem:[%s804 + $0x14] sm:$0xf]
  %v811 = vld [vmem:[%s804 + $0x18] sm:$0xf]
  %v812 = vld [vmem:[%s804 + $0x1c] sm:$0xf]
  %v813 = vld [vmem:[%s804 + $0x20] sm:$0xf]
  %v814 = vld [vmem:[%s804 + $0x24] sm:$0xf]
  %v815 = vld [vmem:[%s804 + $0x28] sm:$0xf]
  %v816 = vld [vmem:[%s804 + $0x2c] sm:$0xf]
  %v817 = vld [vmem:[%s804 + $0x30] sm:$0xf]
  %v818 = vld [vmem:[%s804 + $0x34] sm:$0xf]
  %v819 = vld [vmem:[%s804 + $0x38] sm:$0xf]
  %v820 = vld [vmem:[%s804 + $0x3c] sm:$0xf]
  %v821 = vld [vmem:[%s804 + $0x40] sm:$0xf]
  %v822 = vld [vmem:[%s804 + $0x44] sm:$0xf]
  %v828 = vunpack.c.l.b16 %v780
  %v829 = vunpack.c.h.b16 %v780
  %v830 = vunpack.c.l.b16 %v781
  %v831 = vunpack.c.h.b16 %v781
  %v832 = vunpack.c.l.b16 %v782
  %v833 = vunpack.c.h.b16 %v782
  %v834 = vunpack.c.l.b16 %v783
  %v835 = vunpack.c.h.b16 %v783
  %v836 = vunpack.c.l.b16 %v784
  %v837 = vunpack.c.h.b16 %v784
  %v838 = vpack.c.b16 %v830, %v828
  %v839 = vpack.c.b16 %v831, %v829
  %v840 = vpack.c.b16 %v834, %v832
  %v841 = vpack.c.b16 %v835, %v833
  %v842 = vpack.c.b16 %v836, %v836
  %v843 = vpack.c.b16 %v837, %v837
  %v865 = vunpack.c.l.b16 %v805
  %v866 = vunpack.c.l.b16 %v806
  %v867 = vunpack.c.l.b16 %v807
  %v868 = vunpack.c.l.b16 %v808
  %v869 = vunpack.c.l.b16 %v809
  %v870 = vunpack.c.l.b16 %v810
  %v871 = vunpack.c.l.b16 %v811
  %v872 = vunpack.c.l.b16 %v812
  %v873 = vunpack.c.l.b16 %v813
  %v874 = vunpack.c.l.b16 %v814
  %v875 = vunpack.c.l.b16 %v815
  %v876 = vunpack.c.l.b16 %v816
  %v877 = vunpack.c.l.b16 %v817
  %v878 = vunpack.c.l.b16 %v818
  %v879 = vunpack.c.l.b16 %v819
  %v880 = vunpack.c.l.b16 %v820
  %v881 = vunpack.c.l.b16 %v821
  %v882 = vunpack.c.l.b16 %v822
  %v883 = vpack.c.b16 %v866, %v865
  %v884 = vpack.c.b16 %v868, %v867
  %v885 = vpack.c.b16 %v870, %v869
  %v886 = vpack.c.b16 %v872, %v871
  %v887 = vpack.c.b16 %v874, %v873
  %v888 = vpack.c.b16 %v876, %v875
  %v889 = vpack.c.b16 %v878, %v877
  %v890 = vpack.c.b16 %v880, %v879
  %v891 = vpack.c.b16 %v882, %v881
  %v902 = vsel %vm28, %v839, 0
  %v905 = vsel %vm28, %v841, 0
  %v908 = vsel %vm28, %v843, 0
  %910 = vmatpush.bf16.msra.mxu0 %v890
  %911 = vmatpush.bf16.msra.mxu0 %v889
  %912 = vmatpush.bf16.msra.mxu0 %v888
  %913 = vmatpush.bf16.msra.mxu0 %v887
  %914 = vmatpush.bf16.msra.mxu0 %v886
  %915 = vmatpush.bf16.msra.mxu0 %v885
  %916 = vmatpush.bf16.msra.mxu0 %v884
  %917 = vmatpush.bf16.msra.mxu0 %v883
  %918 = vmatmul.bf16.gmra.mxu0 %v838
  %v919 = vpop.f32.mrf.mxu0
  %v920 = vadd.f32 0.0, %v919
  %v921 = vpop.f32.mrf.mxu0
  %v922 = vadd.f32 0.0, %v921
  %923 = vmatmul.bf16.gmra.mxu0 %v840
  %v924 = vpop.f32.mrf.mxu0
  %v925 = vpop.f32.mrf.mxu0
  %v926 = vadd.f32 0.0, %v925
  %927 = vmatmul.bf16.gmra.mxu0 %v842
  %v928 = vpop.f32.mrf.mxu0
  %v929 = vadd.f32 0.0, %v928
  %v930 = vpop.f32.mrf.mxu0
  %931 = vdwg.mxu0
  %932 = vmatpush.bf16.msra.mxu0 0
  %933 = vmatpush.bf16.msra.mxu0 0
  %934 = vmatpush.bf16.msra.mxu0 0
  %935 = vmatpush.bf16.msra.mxu0 0
  %936 = vmatpush.bf16.msra.mxu0 0
  %937 = vmatpush.bf16.msra.mxu0 0
  %938 = vmatpush.bf16.msra.mxu0 0
  %939 = vmatpush.bf16.msra.mxu0 %v891
  %940 = vmatmul.bf16.gmra.mxu0 %v902
  %v941 = vpop.f32.mrf.mxu0
  %v942 = vadd.f32 %v920, %v941
  %v943 = vpop.f32.mrf.mxu0
  %v944 = vadd.f32 %v922, %v943
  %945 = vmatmul.bf16.gmra.mxu0 %v905
  %v946 = vpop.f32.mrf.mxu0
  %v947 = vpop.f32.mrf.mxu0
  %v948 = vadd.f32 %v926, %v947
  %949 = vmatmul.bf16.gmra.mxu0 %v908
  %v950 = vpop.f32.mrf.mxu0
  %v951 = vadd.f32 %v929, %v950
  %v952 = vpop.f32.mrf.mxu0
  %953 = vdwg.mxu0
  %v955 = vunpack.c.l.b16 %v779
  %v956 = vunpack.c.h.b16 %v779
  %v957 = vpack.c.b16 %v828, %v955
  %v958 = vpack.c.b16 %v829, %v956
  %v959 = vpack.c.b16 %v832, %v830
  %v960 = vpack.c.b16 %v833, %v831
  %v961 = vpack.c.b16 %v836, %v834
  %v962 = vpack.c.b16 %v837, %v835
  %v964 = vshrl.u32 %v957, 16
  %v966 = vrot.slane %v964, 3
  %v967 = vshll.u32 %v957, 16
  %v969 = vrot.slane %v967, 4
  %v970 = vor.u32 %v966, %v969
  %v972 = vshrl.u32 %v959, 16
  %v974 = vrot.slane %v972, 3
  %v975 = vshll.u32 %v959, 16
  %v977 = vrot.slane %v975, 4
  %v978 = vor.u32 %v974, %v977
  %v979 = vsel %vm248, %v970, %v978
  %v981 = vshrl.u32 %v958, 16
  %v983 = vrot.slane %v981, 3
  %v984 = vshll.u32 %v958, 16
  %v986 = vrot.slane %v984, 4
  %v987 = vor.u32 %v983, %v986
  %v989 = vshrl.u32 %v960, 16
  %v991 = vrot.slane %v989, 3
  %v992 = vshll.u32 %v960, 16
  %v994 = vrot.slane %v992, 4
  %v995 = vor.u32 %v991, %v994
  %v996 = vsel %vm248, %v987, %v995
  %v998 = vshrl.u32 %v961, 16
  %v1000 = vrot.slane %v998, 3
  %v1001 = vshll.u32 %v961, 16
  %v1003 = vrot.slane %v1001, 4
  %v1004 = vor.u32 %v1000, %v1003
  %v1005 = vsel %vm248, %v978, %v1004
  %v1007 = vshrl.u32 %v962, 16
  %v1009 = vrot.slane %v1007, 3
  %v1010 = vshll.u32 %v962, 16
  %v1012 = vrot.slane %v1010, 4
  %v1013 = vor.u32 %v1009, %v1012
  %v1014 = vsel %vm248, %v995, %v1013
  %v1036 = vunpack.c.l.b16 %v786
  %v1037 = vunpack.c.l.b16 %v787
  %v1038 = vunpack.c.l.b16 %v788
  %v1039 = vunpack.c.l.b16 %v789
  %v1040 = vunpack.c.l.b16 %v790
  %v1041 = vunpack.c.l.b16 %v791
  %v1042 = vunpack.c.l.b16 %v792
  %v1043 = vunpack.c.l.b16 %v793
  %v1044 = vunpack.c.l.b16 %v794
  %v1045 = vunpack.c.l.b16 %v795
  %v1046 = vunpack.c.l.b16 %v796
  %v1047 = vunpack.c.l.b16 %v797
  %v1048 = vunpack.c.l.b16 %v798
  %v1049 = vunpack.c.l.b16 %v799
  %v1050 = vunpack.c.l.b16 %v800
  %v1051 = vunpack.c.l.b16 %v801
  %v1052 = vunpack.c.l.b16 %v802
  %v1053 = vunpack.c.l.b16 %v803
  %v1054 = vpack.c.b16 %v1037, %v1036
  %v1055 = vpack.c.b16 %v1039, %v1038
  %v1056 = vpack.c.b16 %v1041, %v1040
  %v1057 = vpack.c.b16 %v1043, %v1042
  %v1058 = vpack.c.b16 %v1045, %v1044
  %v1059 = vpack.c.b16 %v1047, %v1046
  %v1060 = vpack.c.b16 %v1049, %v1048
  %v1061 = vpack.c.b16 %v1051, %v1050
  %v1062 = vpack.c.b16 %v1053, %v1052
  %v1073 = vsel %vm28, %v996, 0
  %v1076 = vsel %vm28, %v1014, 0
  %v1079 = vsel %vm28, %v1013, 0
  %1081 = vmatpush.bf16.msra.mxu0 %v1061
  %1082 = vmatpush.bf16.msra.mxu0 %v1060
  %1083 = vmatpush.bf16.msra.mxu0 %v1059
  %1084 = vmatpush.bf16.msra.mxu0 %v1058
  %1085 = vmatpush.bf16.msra.mxu0 %v1057
  %1086 = vmatpush.bf16.msra.mxu0 %v1056
  %1087 = vmatpush.bf16.msra.mxu0 %v1055
  %1088 = vmatpush.bf16.msra.mxu0 %v1054
  %1089 = vmatmul.bf16.gmra.mxu0 %v979
  %v1090 = vpop.f32.mrf.mxu0
  %v1091 = vadd.f32 %v942, %v1090
  %v1092 = vpop.f32.mrf.mxu0
  %v1093 = vadd.f32 %v944, %v1092
  %1094 = vmatmul.bf16.gmra.mxu0 %v1005
  %v1095 = vpop.f32.mrf.mxu0
  %v1096 = vpop.f32.mrf.mxu0
  %v1097 = vadd.f32 %v948, %v1096
  %1098 = vmatmul.bf16.gmra.mxu0 %v1004
  %v1099 = vpop.f32.mrf.mxu0
  %v1100 = vadd.f32 %v951, %v1099
  %v1101 = vpop.f32.mrf.mxu0
  %1102 = vdwg.mxu0
  %1103 = vmatpush.bf16.msra.mxu0 0
  %1104 = vmatpush.bf16.msra.mxu0 0
  %1105 = vmatpush.bf16.msra.mxu0 0
  %1106 = vmatpush.bf16.msra.mxu0 0
  %1107 = vmatpush.bf16.msra.mxu0 0
  %1108 = vmatpush.bf16.msra.mxu0 0
  %1109 = vmatpush.bf16.msra.mxu0 0
  %1110 = vmatpush.bf16.msra.mxu0 %v1062
  %1111 = vmatmul.bf16.gmra.mxu0 %v1073
  %v1112 = vpop.f32.mrf.mxu0
  %v1113 = vadd.f32 %v1091, %v1112
  %v1114 = vpop.f32.mrf.mxu0
  %v1115 = vadd.f32 %v1093, %v1114
  %1116 = vmatmul.bf16.gmra.mxu0 %v1076
  %v1117 = vpop.f32.mrf.mxu0
  %v1118 = vpop.f32.mrf.mxu0
  %v1119 = vadd.f32 %v1097, %v1118
  %1120 = vmatmul.bf16.gmra.mxu0 %v1079
  %v1121 = vpop.f32.mrf.mxu0
  %v1122 = vadd.f32 %v1100, %v1121
  %v1123 = vpop.f32.mrf.mxu0
  %1124 = vdwg.mxu0
  %s1125 = scalar_lea.vmem %s4, 144
  %v1126 = vld [vmem:[%s1125] sm:$0xf]
  %v1127 = vld [vmem:[%s1125 + $0x4] sm:$0xf]
  %v1128 = vld [vmem:[%s1125 + $0x8] sm:$0xf]
  %v1129 = vld [vmem:[%s1125 + $0xc] sm:$0xf]
  %v1130 = vld [vmem:[%s1125 + $0x10] sm:$0xf]
  %v1131 = vld [vmem:[%s1125 + $0x14] sm:$0xf]
  %v1132 = vld [vmem:[%s1125 + $0x18] sm:$0xf]
  %v1133 = vld [vmem:[%s1125 + $0x1c] sm:$0xf]
  %v1134 = vld [vmem:[%s1125 + $0x20] sm:$0xf]
  %v1135 = vld [vmem:[%s1125 + $0x24] sm:$0xf]
  %v1136 = vld [vmem:[%s1125 + $0x28] sm:$0xf]
  %v1137 = vld [vmem:[%s1125 + $0x2c] sm:$0xf]
  %v1138 = vld [vmem:[%s1125 + $0x30] sm:$0xf]
  %v1139 = vld [vmem:[%s1125 + $0x34] sm:$0xf]
  %v1140 = vld [vmem:[%s1125 + $0x38] sm:$0xf]
  %v1141 = vld [vmem:[%s1125 + $0x3c] sm:$0xf]
  %v1142 = vld [vmem:[%s1125 + $0x40] sm:$0xf]
  %v1143 = vld [vmem:[%s1125 + $0x44] sm:$0xf]
  %v1145 = vunpack.c.l.b16 %v785
  %v1146 = vunpack.c.h.b16 %v785
  %v1147 = vpack.c.b16 %v1145, %v836
  %v1148 = vpack.c.b16 %v1146, %v837
  %v1150 = vshrl.u32 %v838, 16
  %v1152 = vshll.u32 %v838, 16
  %v1154 = vrot.slane %v1152, 1
  %v1155 = vor.u32 %v1150, %v1154
  %v1157 = vshll.u32 %v840, 16
  %v1159 = vrot.slane %v1157, 1
  %v1160 = vsel %vm435, %v1155, %v1159
  %v1161 = vshrl.u32 %v839, 16
  %v1163 = vshll.u32 %v839, 16
  %v1165 = vrot.slane %v1163, 1
  %v1166 = vor.u32 %v1161, %v1165
  %v1167 = vshll.u32 %v841, 16
  %v1169 = vrot.slane %v1167, 1
  %v1170 = vsel %vm435, %v1166, %v1169
  %v1171 = vshrl.u32 %v840, 16
  %v1173 = vor.u32 %v1171, %v1159
  %v1175 = vshll.u32 %v1147, 16
  %v1177 = vrot.slane %v1175, 1
  %v1178 = vsel %vm435, %v1173, %v1177
  %v1179 = vshrl.u32 %v841, 16
  %v1181 = vor.u32 %v1179, %v1169
  %v1183 = vshll.u32 %v1148, 16
  %v1185 = vrot.slane %v1183, 1
  %v1186 = vsel %vm435, %v1181, %v1185
  %v1187 = vshrl.u32 %v1147, 16
  %v1189 = vor.u32 %v1187, %v1177
  %v1190 = vshrl.u32 %v1148, 16
  %v1192 = vor.u32 %v1190, %v1185
  %v1214 = vunpack.c.l.b16 %v1126
  %v1215 = vunpack.c.l.b16 %v1127
  %v1216 = vunpack.c.l.b16 %v1128
  %v1217 = vunpack.c.l.b16 %v1129
  %v1218 = vunpack.c.l.b16 %v1130
  %v1219 = vunpack.c.l.b16 %v1131
  %v1220 = vunpack.c.l.b16 %v1132
  %v1221 = vunpack.c.l.b16 %v1133
  %v1222 = vunpack.c.l.b16 %v1134
  %v1223 = vunpack.c.l.b16 %v1135
  %v1224 = vunpack.c.l.b16 %v1136
  %v1225 = vunpack.c.l.b16 %v1137
  %v1226 = vunpack.c.l.b16 %v1138
  %v1227 = vunpack.c.l.b16 %v1139
  %v1228 = vunpack.c.l.b16 %v1140
  %v1229 = vunpack.c.l.b16 %v1141
  %v1230 = vunpack.c.l.b16 %v1142
  %v1231 = vunpack.c.l.b16 %v1143
  %v1232 = vpack.c.b16 %v1215, %v1214
  %v1233 = vpack.c.b16 %v1217, %v1216
  %v1234 = vpack.c.b16 %v1219, %v1218
  %v1235 = vpack.c.b16 %v1221, %v1220
  %v1236 = vpack.c.b16 %v1223, %v1222
  %v1237 = vpack.c.b16 %v1225, %v1224
  %v1238 = vpack.c.b16 %v1227, %v1226
  %v1239 = vpack.c.b16 %v1229, %v1228
  %v1240 = vpack.c.b16 %v1231, %v1230
  %v1251 = vsel %vm28, %v1170, 0
  %v1254 = vsel %vm28, %v1186, 0
  %v1257 = vsel %vm28, %v1192, 0
  %1259 = vmatpush.bf16.msra.mxu0 %v1239
  %1260 = vmatpush.bf16.msra.mxu0 %v1238
  %1261 = vmatpush.bf16.msra.mxu0 %v1237
  %1262 = vmatpush.bf16.msra.mxu0 %v1236
  %1263 = vmatpush.bf16.msra.mxu0 %v1235
  %1264 = vmatpush.bf16.msra.mxu0 %v1234
  %1265 = vmatpush.bf16.msra.mxu0 %v1233
  %1266 = vmatpush.bf16.msra.mxu0 %v1232
  %1267 = vmatmul.bf16.gmra.mxu0 %v1160
  %v1268 = vpop.f32.mrf.mxu0
  %v1269 = vadd.f32 0.0, %v1268
  %v1270 = vpop.f32.mrf.mxu0
  %v1271 = vadd.f32 0.0, %v1270
  %1272 = vmatmul.bf16.gmra.mxu0 %v1178
  %v1273 = vpop.f32.mrf.mxu0
  %v1274 = vpop.f32.mrf.mxu0
  %v1275 = vadd.f32 0.0, %v1274
  %1276 = vmatmul.bf16.gmra.mxu0 %v1189
  %v1277 = vpop.f32.mrf.mxu0
  %v1278 = vadd.f32 0.0, %v1277
  %v1279 = vpop.f32.mrf.mxu0
  %1280 = vdwg.mxu0
  %1281 = vmatpush.bf16.msra.mxu0 0
  %1282 = vmatpush.bf16.msra.mxu0 0
  %1283 = vmatpush.bf16.msra.mxu0 0
  %1284 = vmatpush.bf16.msra.mxu0 0
  %1285 = vmatpush.bf16.msra.mxu0 0
  %1286 = vmatpush.bf16.msra.mxu0 0
  %1287 = vmatpush.bf16.msra.mxu0 0
  %1288 = vmatpush.bf16.msra.mxu0 %v1240
  %1289 = vmatmul.bf16.gmra.mxu0 %v1251
  %v1290 = vpop.f32.mrf.mxu0
  %v1291 = vadd.f32 %v1269, %v1290
  %v1292 = vpop.f32.mrf.mxu0
  %v1293 = vadd.f32 %v1271, %v1292
  %1294 = vmatmul.bf16.gmra.mxu0 %v1254
  %v1295 = vpop.f32.mrf.mxu0
  %v1296 = vpop.f32.mrf.mxu0
  %v1297 = vadd.f32 %v1275, %v1296
  %1298 = vmatmul.bf16.gmra.mxu0 %v1257
  %v1299 = vpop.f32.mrf.mxu0
  %v1300 = vadd.f32 %v1278, %v1299
  %v1301 = vpop.f32.mrf.mxu0
  %1302 = vdwg.mxu0
  %v1303 = vadd.f32 %v1113, %v1291
  %v1304 = vadd.f32 %v1115, %v1293
  %v1305 = vadd.f32 %v1119, %v1297
  %v1306 = vadd.f32 %v1122, %v1300
  %v1307 = vadd.f32 %v1303, %v1304
  %v1308 = vrot.slane %v1307, 4
  %v1309 = vadd.f32 %v1307, %v1308
  %v1310 = vrot.slane %v1309, 2
  %v1311 = vadd.f32 %v1309, %v1310
  %v1312 = vrot.slane %v1311, 1
  %v1313 = vadd.f32 %v1311, %v1312
  %v1314 = vadd.f32 %v1313, 0.0
  %v1315 = vadd.f32 %v1305, %v1306
  %v1316 = vrot.slane %v1315, 4
  %v1317 = vadd.f32 %v1315, %v1316
  %v1318 = vrot.slane %v1317, 2
  %v1319 = vadd.f32 %v1317, %v1318
  %v1320 = vrot.slane %v1319, 1
  %v1321 = vadd.f32 %v1319, %v1320
  %v1322 = vadd.f32 %v1314, %v1321
  %1323 = vrot.lane.b32.xlu0 %v1322, 8
  %v1324 = vpop.permute.xlu0 %1323
  %v1325 = vadd.f32 %v1322, %v1324
  %1326 = vrot.lane.b32.xlu0 %v1322, 16
  %v1327 = vpop.permute.xlu0 %1326
  %v1328 = vadd.f32 %v1325, %v1327
  %1329 = vrot.lane.b32.xlu0 %v1322, 24
  %v1330 = vpop.permute.xlu0 %1329
  %v1331 = vadd.f32 %v1328, %v1330
  %1332 = vrot.lane.b32.xlu0 %v1322, 32
  %v1333 = vpop.permute.xlu0 %1332
  %v1334 = vadd.f32 %v1331, %v1333
  %1335 = vrot.lane.b32.xlu0 %v1322, 40
  %v1336 = vpop.permute.xlu0 %1335
  %v1337 = vadd.f32 %v1334, %v1336
  %1338 = vrot.lane.b32.xlu0 %v1322, 48
  %v1339 = vpop.permute.xlu0 %1338
  %v1340 = vadd.f32 %v1337, %v1339
  %1341 = vrot.lane.b32.xlu0 %v1322, 56
  %v1342 = vpop.permute.xlu0 %1341
  %v1343 = vadd.f32 %v1340, %v1342
  %1344 = vrot.lane.b32.xlu0 %v1322, 64
  %v1345 = vpop.permute.xlu0 %1344
  %v1346 = vadd.f32 %v1343, %v1345
  %1347 = vrot.lane.b32.xlu0 %v1322, 72
  %v1348 = vpop.permute.xlu0 %1347
  %v1349 = vadd.f32 %v1346, %v1348
  %1350 = vrot.lane.b32.xlu0 %v1322, 80
  %v1351 = vpop.permute.xlu0 %1350
  %v1352 = vadd.f32 %v1349, %v1351
  %1353 = vrot.lane.b32.xlu0 %v1322, 88
  %v1354 = vpop.permute.xlu0 %1353
  %v1355 = vadd.f32 %v1352, %v1354
  %1356 = vrot.lane.b32.xlu0 %v1322, 96
  %v1357 = vpop.permute.xlu0 %1356
  %v1358 = vadd.f32 %v1355, %v1357
  %1359 = vrot.lane.b32.xlu0 %v1322, 104
  %v1360 = vpop.permute.xlu0 %1359
  %v1361 = vadd.f32 %v1358, %v1360
  %1362 = vrot.lane.b32.xlu0 %v1322, 112
  %v1363 = vpop.permute.xlu0 %1362
  %v1364 = vadd.f32 %v1361, %v1363
  %1365 = vrot.lane.b32.xlu0 %v1322, 120
  %v1366 = vpop.permute.xlu0 %1365
  %v1367 = vadd.f32 %v1364, %v1366
  %v1368 = vmul.f32 %v1367, 0.001953125
  %v1369 = vperm.slane %v1368, 0
  %v1370 = vsub.f32 %v1303, %v1369
  %v1371 = vsub.f32 %v1304, %v1369
  %v1372 = vmul.f32 %v1370, %v1370
  %v1373 = vmul.f32 %v1371, %v1371
  %v1374 = vadd.f32 %v1372, %v1373
  %v1375 = vrot.slane %v1374, 4
  %v1376 = vadd.f32 %v1374, %v1375
  %v1377 = vrot.slane %v1376, 2
  %v1378 = vadd.f32 %v1376, %v1377
  %v1379 = vrot.slane %v1378, 1
  %v1380 = vadd.f32 %v1378, %v1379
  %v1381 = vadd.f32 %v1380, 0.0
  %v1382 = vsub.f32 %v1305, %v1369
  %v1383 = vsub.f32 %v1306, %v1369
  %v1384 = vmul.f32 %v1382, %v1382
  %v1385 = vmul.f32 %v1383, %v1383
  %v1386 = vadd.f32 %v1384, %v1385
  %v1387 = vrot.slane %v1386, 4
  %v1388 = vadd.f32 %v1386, %v1387
  %v1389 = vrot.slane %v1388, 2
  %v1390 = vadd.f32 %v1388, %v1389
  %v1391 = vrot.slane %v1390, 1
  %v1392 = vadd.f32 %v1390, %v1391
  %v1393 = vadd.f32 %v1381, %v1392
  %1394 = vrot.lane.b32.xlu0 %v1393, 8
  %v1395 = vpop.permute.xlu0 %1394
  %v1396 = vadd.f32 %v1393, %v1395
  %1397 = vrot.lane.b32.xlu0 %v1393, 16
  %v1398 = vpop.permute.xlu0 %1397
  %v1399 = vadd.f32 %v1396, %v1398
  %1400 = vrot.lane.b32.xlu0 %v1393, 24
  %v1401 = vpop.permute.xlu0 %1400
  %v1402 = vadd.f32 %v1399, %v1401
  %1403 = vrot.lane.b32.xlu0 %v1393, 32
  %v1404 = vpop.permute.xlu0 %1403
  %v1405 = vadd.f32 %v1402, %v1404
  %1406 = vrot.lane.b32.xlu0 %v1393, 40
  %v1407 = vpop.permute.xlu0 %1406
  %v1408 = vadd.f32 %v1405, %v1407
  %1409 = vrot.lane.b32.xlu0 %v1393, 48
  %v1410 = vpop.permute.xlu0 %1409
  %v1411 = vadd.f32 %v1408, %v1410
  %1412 = vrot.lane.b32.xlu0 %v1393, 56
  %v1413 = vpop.permute.xlu0 %1412
  %v1414 = vadd.f32 %v1411, %v1413
  %1415 = vrot.lane.b32.xlu0 %v1393, 64
  %v1416 = vpop.permute.xlu0 %1415
  %v1417 = vadd.f32 %v1414, %v1416
  %1418 = vrot.lane.b32.xlu0 %v1393, 72
  %v1419 = vpop.permute.xlu0 %1418
  %v1420 = vadd.f32 %v1417, %v1419
  %1421 = vrot.lane.b32.xlu0 %v1393, 80
  %v1422 = vpop.permute.xlu0 %1421
  %v1423 = vadd.f32 %v1420, %v1422
  %1424 = vrot.lane.b32.xlu0 %v1393, 88
  %v1425 = vpop.permute.xlu0 %1424
  %v1426 = vadd.f32 %v1423, %v1425
  %1427 = vrot.lane.b32.xlu0 %v1393, 96
  %v1428 = vpop.permute.xlu0 %1427
  %v1429 = vadd.f32 %v1426, %v1428
  %1430 = vrot.lane.b32.xlu0 %v1393, 104
  %v1431 = vpop.permute.xlu0 %1430
  %v1432 = vadd.f32 %v1429, %v1431
  %1433 = vrot.lane.b32.xlu0 %v1393, 112
  %v1434 = vpop.permute.xlu0 %1433
  %v1435 = vadd.f32 %v1432, %v1434
  %1436 = vrot.lane.b32.xlu0 %v1393, 120
  %v1437 = vpop.permute.xlu0 %1436
  %v1438 = vadd.f32 %v1435, %v1437
  %v1439 = vmul.f32 %v1438, 0.001953125
  %v1440 = vld [vmem:[%s5] sm:$0x1]
  %v1441 = vadd.f32 %v1439, 1e-05
  %v1442 = vrsqrt.pop %v1441
  %v1443 = vmul.f32 %v1442, %v1441
  %v1444 = vmul.f32 %v1443, %v1442
  %v1445 = vmul.f32 0.5, %v1444
  %v1446 = vsub.f32 1.5, %v1445
  %v1447 = vmul.f32 %v1442, %v1446
  %vm1448 = vweird.f32 %v1441
  %vm1449 = vweird.f32 %v1442
  %vm1450 = vmor %vm1448, %vm1449
  %v1451 = vsel %vm1450, %v1442, %v1447
  %v1452 = vmul.f32 %v1440, %v1451
  %v1453 = vld [vmem:[%s6] sm:$0x1]
  %v1454 = vmul.f32 %v1368, %v1452
  %v1455 = vsub.f32 %v1453, %v1454
  %v1457 = vperm.slane %v1452, 0
  %v1459 = vmul.f32 %v1303, %v1457
  %v1460 = vmul.f32 %v1304, %v1457
  %v1462 = vperm.slane %v1455, 0
  %v1464 = vadd.f32 %v1459, %v1462
  %v1465 = vadd.f32 %v1460, %v1462
  %v1466 = vld [vmem:[%s0] sm:$0xff]
  %v1467 = vld [vmem:[%s0 + $0x8] sm:$0xff]
  %v1468 = vadd.f32 %v1464, %v1466
  %v1469 = vadd.f32 %v1465, %v1467
  %v1470 = vmax.f32 %v1468, 0.0
  %v1471 = vmax.f32 %v1469, 0.0
  %1472 = vst [vmem:[%s7] sm:$0xff] %v1470
  %1473 = vst [vmem:[%s7 + $0x8] sm:$0xff] %v1471
  %v1474 = vmul.f32 %v1305, %v1457
  %v1475 = vmul.f32 %v1306, %v1457
  %v1476 = vadd.f32 %v1474, %v1462
  %v1477 = vadd.f32 %v1475, %v1462
  %v1478 = vld [vmem:[%s0 + $0x10] sm:$0xff]
  %v1479 = vld [vmem:[%s0 + $0x18] sm:$0xff]
  %v1480 = vadd.f32 %v1476, %v1478
  %v1481 = vadd.f32 %v1477, %v1479
  %v1482 = vmax.f32 %v1480, 0.0
  %v1483 = vmax.f32 %v1481, 0.0
  %1484 = vst [vmem:[%s7 + $0x10] sm:$0xff] %v1482
  %1485 = vst [vmem:[%s7 + $0x18] sm:$0xff] %v1483
  // Predicated region
  $region30: #{basic_block_forward.1} parent=0 // pred_check
    _
  $region31: #{basic_block_forward.1} parent=0 // pred_check_branch
    %1487 = sbr.rel (0) target = $region33
  $region32: #{basic_block_forward.1} parent=0 // pred_region
    _
  $region33: #{basic_block_forward.1} parent=0 // pred_fallthru
    _
  // Predicated region
  $region34: #{basic_block_forward.1} parent=0 // pred_check
    _
  $region35: #{basic_block_forward.1} parent=0 // pred_check_branch
    %1489 = sbr.rel (0) target = $region37
  $region36: #{basic_block_forward.1} parent=0 // pred_region
    _
  $region37: #{basic_block_forward.1} parent=0 // pred_fallthru
    _

</llo_original>
